<compile_context>
chip_gen: v6e
topology: v6e:2x2x1
jax: 0.10.0
libtpu: 0.0.40
codegen_flags: <defaults>
</compile_context>

<pallas_src>
import functools
import math

import jax
import jax.numpy as jnp
from jax import lax
from jax.experimental import pallas as pl
from jax.experimental.pallas import tpu as pltpu


def _layernorm(x, g, b, eps):
    # x: (N, D); g, b: (1, D). PyTorch LayerNorm-in-module semantics:
    # mean over last dim, unbiased std, eps added to std.
    d = x.shape[-1]
    mean = jnp.mean(x, axis=-1, keepdims=True)
    diff = x - mean
    var = jnp.sum(diff * diff, axis=-1, keepdims=True) * (1.0 / (d - 1))
    inv = pl.reciprocal(jnp.sqrt(var) + eps, approx=True)   # EUP, not VALU div
    return g * diff * inv + b


def encoder_layer_kernel(
    x_ref, mask_ref,
    g1_ref, be1_ref,
    wq_ref, bq_ref, wk_ref, bk_ref, wv_ref, bv_ref, wo_ref, bo_ref,
    g2_ref, be2_ref,
    w1_ref, bf1_ref, w2_ref, bf2_ref,
    o_ref,
    *, num_heads, eps, matmul_dtype,
):
    mdt = matmul_dtype
    Bt, S, D = x_ref.shape
    Dh = D // num_heads
    scale = 1.0 / math.sqrt(Dh)

    # Fold the batch block into rows: matmuls contract over (Bt*S, D).
    x = x_ref[...].reshape(Bt * S, D)            # f32

    # Resident weights (constant index maps -> loaded once per grid step).
    wq = wq_ref[...]
    wk = wk_ref[...]
    wv = wv_ref[...]
    wo = wo_ref[...]
    w1 = w1_ref[...]
    w2 = w2_ref[...]

    # ---- sublayer 0: self-attention on LayerNorm(x), residual add ----
    xn = _layernorm(x, g1_ref[...], be1_ref[...], eps)
    xn_mm = xn.astype(mdt)
    q = jnp.dot(xn_mm, wq, preferred_element_type=jnp.float32) + bq_ref[...]
    k = jnp.dot(xn_mm, wk, preferred_element_type=jnp.float32) + bk_ref[...]
    v = jnp.dot(xn_mm, wv, preferred_element_type=jnp.float32) + bv_ref[...]
    q_mm = q.astype(mdt)
    k_mm = k.astype(mdt)
    v_mm = v.astype(mdt)

    rows = []
    for b in range(Bt):
        # Mask bias hoisted out of the head loop: one select, H cheap adds.
        bias = jnp.where(mask_ref[b] == 0.0, -1e9, 0.0)      # (1, S), f32
        qb = q_mm[b * S:(b + 1) * S, :]
        kb = k_mm[b * S:(b + 1) * S, :]
        vb = v_mm[b * S:(b + 1) * S, :]
        acc = jnp.zeros((S, D), jnp.float32)
        for h in range(num_heads):
            sl = slice(h * Dh, (h + 1) * Dh)
            # q @ k^T without an explicit transpose (contract last dims on MXU).
            scores = lax.dot_general(
                qb[:, sl], kb[:, sl],
                dimension_numbers=(((1,), (1,)), ((), ())),
                preferred_element_type=jnp.float32) * scale
            scores = scores + bias
            scores = scores - jnp.max(scores, axis=-1, keepdims=True)
            p = jnp.exp(scores)
            p = p * pl.reciprocal(jnp.sum(p, axis=-1, keepdims=True), approx=True)
            pv = jnp.dot(p.astype(mdt), vb[:, sl],
                         preferred_element_type=jnp.float32)          # (S, Dh)
            # Accumulate (p @ v_h) @ W_o[h*Dh:(h+1)*Dh, :] directly:
            # no lane-dim concatenate of head outputs.
            acc = acc + jnp.dot(pv.astype(mdt), wo[sl, :],
                                preferred_element_type=jnp.float32)   # (S, D)
        rows.append(acc)
    attn_out = rows[0] if Bt == 1 else jnp.concatenate(rows, axis=0)
    x1 = x + attn_out + bo_ref[...]              # residual (dropout = identity)

    # ---- sublayer 1: feed-forward on LayerNorm(x1), residual add ----
    # TODO(synk): for very large Dff/S on v7x (64 MiB VMEM), tile the FFN over
    # Dff chunks / use a KV-tiled attention loop instead of full (S,Dff)/(S,S).
    xn2 = _layernorm(x1, g2_ref[...], be2_ref[...], eps)
    h1 = jnp.dot(xn2.astype(mdt), w1, preferred_element_type=jnp.float32) + bf1_ref[...]
    h1 = jnp.maximum(h1, 0.0)
    ff = jnp.dot(h1.astype(mdt), w2, preferred_element_type=jnp.float32) + bf2_ref[...]

    out = (x1 + ff).reshape(Bt, S, D).astype(o_ref.dtype)
    o_ref[...] = out


def _vmem_limit_bytes(Bt, S, D, Dff, matmul_dtype):
    f32 = 4
    wb = jnp.dtype(matmul_dtype).itemsize
    weights = (4 * D * D + 2 * D * Dff) * wb              # wq,wk,wv,wo,w1,w2
    small = (8 * D + Dff) * f32                           # biases + LN params
    io_block = (2 * Bt * S * D + Bt * S) * f32            # x + out + mask
    resident = 2 * (weights + small + io_block)           # pipeline double-buffer
    scratch = Bt * S * (10 * D + 2 * Dff) * f32 + S * S * f32
    total = int(1.5 * (resident + scratch))
    return max(32 * 1024 * 1024, min(64 * 1024 * 1024, total))


def encoder_layer(x, mask, params, *, num_heads, eps=1e-6,
                  matmul_dtype=jnp.bfloat16, batch_block=1):
    B, S, D = x.shape
    Dff = params["w1"].shape[-1]
    assert D % num_heads == 0
    assert B % batch_block == 0
    Bt = batch_block
    mdt = jnp.dtype(matmul_dtype)

    # Cast weight matrices once outside the kernel: halves weight DMA bytes and
    # VMEM residency when matmul_dtype=bf16. Biases / LN params stay f32.
    wq = params["wq"].astype(mdt)
    wk = params["wk"].astype(mdt)
    wv = params["wv"].astype(mdt)
    wo = params["wo"].astype(mdt)
    w1 = params["w1"].astype(mdt)
    w2 = params["w2"].astype(mdt)

    def batch_map(i):
        return (i, 0, 0)

    def const2_map(i):
        return (0, 0)

    # Constant index maps -> weight blocks are not re-DMA'd across grid steps.
    # (pipeline_mode=pl.Buffered(1) would also halve their VMEM footprint; left
    # at the default here to stay conservative about lowering support.)
    full2 = lambda shape: pl.BlockSpec(shape, const2_map)

    in_specs = [
        pl.BlockSpec((Bt, S, D), batch_map),     # x
        pl.BlockSpec((Bt, 1, S), batch_map),     # mask
        full2((1, D)), full2((1, D)),            # g1, be1
        full2((D, D)), full2((1, D)),            # wq, bq
        full2((D, D)), full2((1, D)),            # wk, bk
        full2((D, D)), full2((1, D)),            # wv, bv
        full2((D, D)), full2((1, D)),            # wo, bo
        full2((1, D)), full2((1, D)),            # g2, be2
        full2((D, Dff)), full2((1, Dff)),        # w1, bf1
        full2((Dff, D)), full2((1, D)),          # w2, bf2
    ]

    kernel = functools.partial(
        encoder_layer_kernel, num_heads=num_heads, eps=eps, matmul_dtype=mdt)

    return pl.pallas_call(
        kernel,
        out_shape=jax.ShapeDtypeStruct((B, S, D), x.dtype),
        grid_spec=pltpu.PrefetchScalarGridSpec(
            num_scalar_prefetch=0,
            grid=(B // Bt,),
            in_specs=in_specs,
            out_specs=pl.BlockSpec((Bt, S, D), batch_map),
        ),
        compiler_params=pltpu.CompilerParams(
            dimension_semantics=("parallel",),
            vmem_limit_bytes=_vmem_limit_bytes(Bt, S, D, Dff, mdt),
        ),
    )(
        x, mask,
        params["g1"], params["be1"],
        wq, params["bq"], wk, params["bk"],
        wv, params["bv"], wo, params["bo"],
        params["g2"], params["be2"],
        w1, params["bf1"], w2, params["bf2"],
    )


def _reference(x, mask, params, num_heads, eps=1e-6, matmul_dtype=jnp.float32):
    # Pure-JAX reference mirroring the PyTorch forward pass (eval mode).
    # Matmul operands are cast to `matmul_dtype` (f32 accumulation) so the
    # mixed-precision kernel is compared against the same arithmetic.
    mdt = jnp.dtype(matmul_dtype)

    def mm(a, b):
        return jnp.dot(a.astype(mdt), b.astype(mdt),
                       preferred_element_type=jnp.float32)

    def ln(t, g, bb):
        d = t.shape[-1]
        mean = jnp.mean(t, -1, keepdims=True)
        var = jnp.sum((t - mean) ** 2, -1, keepdims=True) / (d - 1)
        return g * (t - mean) / (jnp.sqrt(var) + eps) + bb

    B, S, D = x.shape
    Dh = D // num_heads
    scale = 1.0 / math.sqrt(Dh)
    xn = ln(x, params["g1"], params["be1"])
    q = mm(xn, params["wq"]) + params["bq"]
    k = mm(xn, params["wk"]) + params["bk"]
    v = mm(xn, params["wv"]) + params["bv"]
    q = q.reshape(B, S, num_heads, Dh).transpose(0, 2, 1, 3)
    k = k.reshape(B, S, num_heads, Dh).transpose(0, 2, 1, 3)
    v = v.reshape(B, S, num_heads, Dh).transpose(0, 2, 1, 3)
    scores = jnp.einsum("bhqd,bhkd->bhqk", q.astype(mdt), k.astype(mdt),
                        preferred_element_type=jnp.float32) * scale
    m = mask[:, None, :, :]                      # (B,1,1,S)
    scores = jnp.where(m == 0, -1e9, scores)
    p = jax.nn.softmax(scores, axis=-1)
    attn = jnp.einsum("bhqk,bhkd->bhqd", p.astype(mdt), v.astype(mdt),
                      preferred_element_type=jnp.float32)
    attn = attn.transpose(0, 2, 1, 3).reshape(B, S, D)
    x1 = x + mm(attn, params["wo"]) + params["bo"]
    xn2 = ln(x1, params["g2"], params["be2"])
    h1 = jnp.maximum(mm(xn2, params["w1"]) + params["bf1"], 0.0)
    ff = mm(h1, params["w2"]) + params["bf2"]
    return x1 + ff


if __name__ == "__main__":
    B, S, D, H, Dff = 2, 8, 32, 4, 64
    key = jax.random.PRNGKey(0)
    ks = jax.random.split(key, 14)

    params = {
        "g1": jnp.ones((1, D), jnp.float32),
        "be1": jnp.zeros((1, D), jnp.float32),
        "wq": 0.1 * jax.random.normal(ks[0], (D, D), jnp.float32),
        "bq": 0.1 * jax.random.normal(ks[1], (1, D), jnp.float32),
        "wk": 0.1 * jax.random.normal(ks[2], (D, D), jnp.float32),
        "bk": 0.1 * jax.random.normal(ks[3], (1, D), jnp.float32),
        "wv": 0.1 * jax.random.normal(ks[4], (D, D), jnp.float32),
        "bv": 0.1 * jax.random.normal(ks[5], (1, D), jnp.float32),
        "wo": 0.1 * jax.random.normal(ks[6], (D, D), jnp.float32),
        "bo": 0.1 * jax.random.normal(ks[7], (1, D), jnp.float32),
        "g2": jnp.ones((1, D), jnp.float32),
        "be2": jnp.zeros((1, D), jnp.float32),
        "w1": 0.1 * jax.random.normal(ks[8], (D, Dff), jnp.float32),
        "bf1": 0.1 * jax.random.normal(ks[9], (1, Dff), jnp.float32),
        "w2": 0.1 * jax.random.normal(ks[10], (Dff, D), jnp.float32),
        "bf2": 0.1 * jax.random.normal(ks[11], (1, D), jnp.float32),
    }

    x = jax.random.normal(ks[12], (B, S, D), jnp.float32)
    # mask: (B, 1, S); second batch element has last 3 positions masked out.
    mask = jnp.ones((B, 1, S), jnp.float32)
    mask = mask.at[1, 0, S - 3:].set(0.0)

    # Run 1: bf16 matmul operands (default), one batch per grid step
    # (2 "parallel" steps -> both v7x TensorCores have work).
    out_bf16 = encoder_layer(x, mask, params, num_heads=H,
                             matmul_dtype=jnp.bfloat16, batch_block=1)
    out_bf16 = jax.block_until_ready(out_bf16)
    ref_bf16 = _reference(x, mask, params, H, matmul_dtype=jnp.bfloat16)
    err_bf16 = float(jnp.max(jnp.abs(out_bf16 - ref_bf16)))
    assert out_bf16.shape == (B, S, D)
    assert err_bf16 < 1e-2, err_bf16

    # Run 2: f32 matmuls, two batches per grid step (amortized per-step overhead).
    out_f32 = encoder_layer(x, mask, params, num_heads=H,
                            matmul_dtype=jnp.float32, batch_block=2)
    out_f32 = jax.block_until_ready(out_f32)
    ref_f32 = _reference(x, mask, params, H, matmul_dtype=jnp.float32)
    err_f32 = float(jnp.max(jnp.abs(out_f32 - ref_f32)))
    assert out_f32.shape == (B, S, D)
    assert err_f32 < 5e-3, err_f32

    print("KERNEL_OK")
</pallas_src>

<mosaic_0001>
module attributes {stable_mosaic.version = 11 : i64} {
  func.func @encoder_layer_kernel(%arg0: i32, %arg1: memref<1x8x32xf32, #tpu.memory_space<vmem>>, %arg2: memref<1x1x8xf32, #tpu.memory_space<vmem>>, %arg3: memref<1x32xf32, #tpu.memory_space<vmem>>, %arg4: memref<1x32xf32, #tpu.memory_space<vmem>>, %arg5: memref<32x32xbf16, #tpu.memory_space<vmem>>, %arg6: memref<1x32xf32, #tpu.memory_space<vmem>>, %arg7: memref<32x32xbf16, #tpu.memory_space<vmem>>, %arg8: memref<1x32xf32, #tpu.memory_space<vmem>>, %arg9: memref<32x32xbf16, #tpu.memory_space<vmem>>, %arg10: memref<1x32xf32, #tpu.memory_space<vmem>>, %arg11: memref<32x32xbf16, #tpu.memory_space<vmem>>, %arg12: memref<1x32xf32, #tpu.memory_space<vmem>>, %arg13: memref<1x32xf32, #tpu.memory_space<vmem>>, %arg14: memref<1x32xf32, #tpu.memory_space<vmem>>, %arg15: memref<32x64xbf16, #tpu.memory_space<vmem>>, %arg16: memref<1x64xf32, #tpu.memory_space<vmem>>, %arg17: memref<64x32xbf16, #tpu.memory_space<vmem>>, %arg18: memref<1x32xf32, #tpu.memory_space<vmem>>, %arg19: memref<1x8x32xf32, #tpu.memory_space<vmem>>) attributes {dimension_semantics = [#tpu.dimension_semantics<parallel>], iteration_bounds = array<i64: 2>, scalar_prefetch = 0 : i64, scratch_operands = 0 : i64, tpu.core_type = #tpu.core_type<tc>, window_params = [{transform_indices = @transform_0, window_bounds = array<i64: 1, 8, 32>}, {transform_indices = @transform_1, window_bounds = array<i64: 1, 1, 8>}, {pipeline_mode = #tpu.pipeline_mode<synchronous>, transform_indices = @transform_2, window_bounds = array<i64: 1, 32>}, {pipeline_mode = #tpu.pipeline_mode<synchronous>, transform_indices = @transform_3, window_bounds = array<i64: 1, 32>}, {pipeline_mode = #tpu.pipeline_mode<synchronous>, transform_indices = @transform_4, window_bounds = array<i64: 32, 32>}, {pipeline_mode = #tpu.pipeline_mode<synchronous>, transform_indices = @transform_5, window_bounds = array<i64: 1, 32>}, {pipeline_mode = #tpu.pipeline_mode<synchronous>, transform_indices = @transform_6, window_bounds = array<i64: 32, 32>}, {pipeline_mode = #tpu.pipeline_mode<synchronous>, transform_indices = @transform_7, window_bounds = array<i64: 1, 32>}, {pipeline_mode = #tpu.pipeline_mode<synchronous>, transform_indices = @transform_8, window_bounds = array<i64: 32, 32>}, {pipeline_mode = #tpu.pipeline_mode<synchronous>, transform_indices = @transform_9, window_bounds = array<i64: 1, 32>}, {pipeline_mode = #tpu.pipeline_mode<synchronous>, transform_indices = @transform_10, window_bounds = array<i64: 32, 32>}, {pipeline_mode = #tpu.pipeline_mode<synchronous>, transform_indices = @transform_11, window_bounds = array<i64: 1, 32>}, {pipeline_mode = #tpu.pipeline_mode<synchronous>, transform_indices = @transform_12, window_bounds = array<i64: 1, 32>}, {pipeline_mode = #tpu.pipeline_mode<synchronous>, transform_indices = @transform_13, window_bounds = array<i64: 1, 32>}, {pipeline_mode = #tpu.pipeline_mode<synchronous>, transform_indices = @transform_14, window_bounds = array<i64: 32, 64>}, {pipeline_mode = #tpu.pipeline_mode<synchronous>, transform_indices = @transform_15, window_bounds = array<i64: 1, 64>}, {pipeline_mode = #tpu.pipeline_mode<synchronous>, transform_indices = @transform_16, window_bounds = array<i64: 64, 32>}, {pipeline_mode = #tpu.pipeline_mode<synchronous>, transform_indices = @transform_17, window_bounds = array<i64: 1, 32>}, {transform_indices = @transform_18, window_bounds = array<i64: 1, 8, 32>}]} {
    %c0 = arith.constant 0 : index
    %c0_0 = arith.constant 0 : index
    %c0_1 = arith.constant 0 : index
    %0 = vector.load %arg1[%c0, %c0_0, %c0_1] : memref<1x8x32xf32, #tpu.memory_space<vmem>>, vector<1x8x32xf32>
    %1 = vector.shape_cast %0 : vector<1x8x32xf32> to vector<8x32xf32>
    %c0_2 = arith.constant 0 : index
    %c0_3 = arith.constant 0 : index
    %2 = vector.load %arg5[%c0_2, %c0_3] : memref<32x32xbf16, #tpu.memory_space<vmem>>, vector<32x32xbf16>
    %c0_4 = arith.constant 0 : index
    %c0_5 = arith.constant 0 : index
    %3 = vector.load %arg7[%c0_4, %c0_5] : memref<32x32xbf16, #tpu.memory_space<vmem>>, vector<32x32xbf16>
    %c0_6 = arith.constant 0 : index
    %c0_7 = arith.constant 0 : index
    %4 = vector.load %arg9[%c0_6, %c0_7] : memref<32x32xbf16, #tpu.memory_space<vmem>>, vector<32x32xbf16>
    %c0_8 = arith.constant 0 : index
    %c0_9 = arith.constant 0 : index
    %5 = vector.load %arg11[%c0_8, %c0_9] : memref<32x32xbf16, #tpu.memory_space<vmem>>, vector<32x32xbf16>
    %c0_10 = arith.constant 0 : index
    %c0_11 = arith.constant 0 : index
    %6 = vector.load %arg15[%c0_10, %c0_11] : memref<32x64xbf16, #tpu.memory_space<vmem>>, vector<32x64xbf16>
    %c0_12 = arith.constant 0 : index
    %c0_13 = arith.constant 0 : index
    %7 = vector.load %arg17[%c0_12, %c0_13] : memref<64x32xbf16, #tpu.memory_space<vmem>>, vector<64x32xbf16>
    %c0_14 = arith.constant 0 : index
    %c0_15 = arith.constant 0 : index
    %8 = vector.load %arg3[%c0_14, %c0_15] : memref<1x32xf32, #tpu.memory_space<vmem>>, vector<1x32xf32>
    %c0_16 = arith.constant 0 : index
    %c0_17 = arith.constant 0 : index
    %9 = vector.load %arg4[%c0_16, %c0_17] : memref<1x32xf32, #tpu.memory_space<vmem>>, vector<1x32xf32>
    %cst = arith.constant dense<0.000000e+00> : vector<8xf32>
    %10 = vector.multi_reduction <add>, %1, %cst [1] : vector<8x32xf32> to vector<8xf32>
    %11 = vector.shape_cast %10 : vector<8xf32> to vector<8x1xf32>
    %cst_18 = arith.constant 3.200000e+01 : f32
    %12 = vector.broadcast %cst_18 : f32 to vector<8x1xf32>
    %13 = arith.divf %11, %12 : vector<8x1xf32>
    %14 = vector.broadcast %13 : vector<8x1xf32> to vector<8x32xf32>
    %15 = arith.subf %1, %14 : vector<8x32xf32>
    %16 = arith.mulf %15, %15 : vector<8x32xf32>
    %cst_19 = arith.constant dense<0.000000e+00> : vector<8xf32>
    %17 = vector.multi_reduction <add>, %16, %cst_19 [1] : vector<8x32xf32> to vector<8xf32>
    %18 = vector.shape_cast %17 : vector<8xf32> to vector<8x1xf32>
    %cst_20 = arith.constant 0.0322580636 : f32
    %19 = vector.broadcast %cst_20 : f32 to vector<8x1xf32>
    %20 = arith.mulf %18, %19 : vector<8x1xf32>
    %21 = math.sqrt %20 : vector<8x1xf32>
    %cst_21 = arith.constant 9.99999997E-7 : f32
    %22 = vector.broadcast %cst_21 : f32 to vector<8x1xf32>
    %23 = arith.addf %21, %22 : vector<8x1xf32>
    %24 = tpu.reciprocal %23 {approx = true} : vector<8x1xf32> -> vector<8x1xf32>
    %25 = vector.broadcast %8 : vector<1x32xf32> to vector<8x32xf32>
    %26 = arith.mulf %25, %15 : vector<8x32xf32>
    %27 = vector.broadcast %24 : vector<8x1xf32> to vector<8x32xf32>
    %28 = arith.mulf %26, %27 : vector<8x32xf32>
    %29 = vector.broadcast %9 : vector<1x32xf32> to vector<8x32xf32>
    %30 = arith.addf %28, %29 : vector<8x32xf32>
    %31 = arith.truncf %30 : vector<8x32xf32> to vector<8x32xbf16>
    %cst_22 = arith.constant dense<0.000000e+00> : vector<8x32xf32>
    %32 = tpu.matmul %31, %2, %cst_22 {dimension_numbers = #tpu.dot_dimension_numbers<[1], [0], [0], [1], [0, 0, 1, 1], [], []>} : vector<8x32xbf16>, vector<32x32xbf16>, vector<8x32xf32> -> vector<8x32xf32>
    %c0_23 = arith.constant 0 : index
    %c0_24 = arith.constant 0 : index
    %33 = vector.load %arg6[%c0_23, %c0_24] : memref<1x32xf32, #tpu.memory_space<vmem>>, vector<1x32xf32>
    %34 = vector.broadcast %33 : vector<1x32xf32> to vector<8x32xf32>
    %35 = arith.addf %32, %34 : vector<8x32xf32>
    %cst_25 = arith.constant dense<0.000000e+00> : vector<8x32xf32>
    %36 = tpu.matmul %31, %3, %cst_25 {dimension_numbers = #tpu.dot_dimension_numbers<[1], [0], [0], [1], [0, 0, 1, 1], [], []>} : vector<8x32xbf16>, vector<32x32xbf16>, vector<8x32xf32> -> vector<8x32xf32>
    %c0_26 = arith.constant 0 : index
    %c0_27 = arith.constant 0 : index
    %37 = vector.load %arg8[%c0_26, %c0_27] : memref<1x32xf32, #tpu.memory_space<vmem>>, vector<1x32xf32>
    %38 = vector.broadcast %37 : vector<1x32xf32> to vector<8x32xf32>
    %39 = arith.addf %36, %38 : vector<8x32xf32>
    %cst_28 = arith.constant dense<0.000000e+00> : vector<8x32xf32>
    %40 = tpu.matmul %31, %4, %cst_28 {dimension_numbers = #tpu.dot_dimension_numbers<[1], [0], [0], [1], [0, 0, 1, 1], [], []>} : vector<8x32xbf16>, vector<32x32xbf16>, vector<8x32xf32> -> vector<8x32xf32>
    %c0_29 = arith.constant 0 : index
    %c0_30 = arith.constant 0 : index
    %41 = vector.load %arg10[%c0_29, %c0_30] : memref<1x32xf32, #tpu.memory_space<vmem>>, vector<1x32xf32>
    %42 = vector.broadcast %41 : vector<1x32xf32> to vector<8x32xf32>
    %43 = arith.addf %40, %42 : vector<8x32xf32>
    %44 = arith.truncf %35 : vector<8x32xf32> to vector<8x32xbf16>
    %45 = arith.truncf %39 : vector<8x32xf32> to vector<8x32xbf16>
    %46 = arith.truncf %43 : vector<8x32xf32> to vector<8x32xbf16>
    %c0_31 = arith.constant 0 : index
    %c0_32 = arith.constant 0 : index
    %c0_33 = arith.constant 0 : index
    %47 = vector.load %arg2[%c0_31, %c0_32, %c0_33] : memref<1x1x8xf32, #tpu.memory_space<vmem>>, vector<1x1x8xf32>
    %48 = vector.shape_cast %47 : vector<1x1x8xf32> to vector<1x8xf32>
    %cst_34 = arith.constant 0.000000e+00 : f32
    %49 = vector.broadcast %cst_34 : f32 to vector<1x8xf32>
    %50 = arith.cmpf oeq, %48, %49 : vector<1x8xf32>
    %cst_35 = arith.constant -1.000000e+09 : f32
    %cst_36 = arith.constant 0.000000e+00 : f32
    %51 = vector.broadcast %cst_35 : f32 to vector<1x8xf32>
    %52 = vector.broadcast %cst_36 : f32 to vector<1x8xf32>
    %53 = arith.select %50, %51, %52 : vector<1x8xi1>, vector<1x8xf32>
    %cst_37 = arith.constant 0.000000e+00 : f32
    %54 = vector.broadcast %cst_37 : f32 to vector<8x32xf32>
    %55 = vector.extract_strided_slice %44 {offsets = [0, 0], sizes = [8, 8], strides = [1, 1]} : vector<8x32xbf16> to vector<8x8xbf16>
    %56 = vector.extract_strided_slice %45 {offsets = [0, 0], sizes = [8, 8], strides = [1, 1]} : vector<8x32xbf16> to vector<8x8xbf16>
    %cst_38 = arith.constant dense<0.000000e+00> : vector<8x8xf32>
    %57 = tpu.matmul %55, %56, %cst_38 {dimension_numbers = #tpu.dot_dimension_numbers<[1], [1], [0], [0], [0, 0, 1, 0], [], []>} : vector<8x8xbf16>, vector<8x8xbf16>, vector<8x8xf32> -> vector<8x8xf32>
    %cst_39 = arith.constant 0.353553385 : f32
    %58 = vector.broadcast %cst_39 : f32 to vector<8x8xf32>
    %59 = arith.mulf %57, %58 : vector<8x8xf32>
    %60 = vector.broadcast %53 : vector<1x8xf32> to vector<8x8xf32>
    %61 = arith.addf %59, %60 : vector<8x8xf32>
    %cst_40 = arith.constant dense<0xFF800000> : vector<8xf32>
    %62 = vector.multi_reduction <maximumf>, %61, %cst_40 [1] : vector<8x8xf32> to vector<8xf32>
    %63 = vector.shape_cast %62 : vector<8xf32> to vector<8x1xf32>
    %64 = vector.broadcast %63 : vector<8x1xf32> to vector<8x8xf32>
    %65 = arith.subf %61, %64 : vector<8x8xf32>
    %66 = math.exp %65 : vector<8x8xf32>
    %cst_41 = arith.constant dense<0.000000e+00> : vector<8xf32>
    %67 = vector.multi_reduction <add>, %66, %cst_41 [1] : vector<8x8xf32> to vector<8xf32>
    %68 = vector.shape_cast %67 : vector<8xf32> to vector<8x1xf32>
    %69 = tpu.reciprocal %68 {approx = true} : vector<8x1xf32> -> vector<8x1xf32>
    %70 = vector.broadcast %69 : vector<8x1xf32> to vector<8x8xf32>
    %71 = arith.mulf %66, %70 : vector<8x8xf32>
    %72 = arith.truncf %71 : vector<8x8xf32> to vector<8x8xbf16>
    %73 = vector.extract_strided_slice %46 {offsets = [0, 0], sizes = [8, 8], strides = [1, 1]} : vector<8x32xbf16> to vector<8x8xbf16>
    %cst_42 = arith.constant dense<0.000000e+00> : vector<8x8xf32>
    %74 = tpu.matmul %72, %73, %cst_42 {dimension_numbers = #tpu.dot_dimension_numbers<[1], [0], [0], [1], [0, 0, 1, 1], [], []>} : vector<8x8xbf16>, vector<8x8xbf16>, vector<8x8xf32> -> vector<8x8xf32>
    %75 = arith.truncf %74 : vector<8x8xf32> to vector<8x8xbf16>
    %76 = vector.extract_strided_slice %5 {offsets = [0, 0], sizes = [8, 32], strides = [1, 1]} : vector<32x32xbf16> to vector<8x32xbf16>
    %cst_43 = arith.constant dense<0.000000e+00> : vector<8x32xf32>
    %77 = tpu.matmul %75, %76, %cst_43 {dimension_numbers = #tpu.dot_dimension_numbers<[1], [0], [0], [1], [0, 0, 1, 1], [], []>} : vector<8x8xbf16>, vector<8x32xbf16>, vector<8x32xf32> -> vector<8x32xf32>
    %78 = arith.addf %54, %77 : vector<8x32xf32>
    %79 = vector.extract_strided_slice %44 {offsets = [0, 8], sizes = [8, 8], strides = [1, 1]} : vector<8x32xbf16> to vector<8x8xbf16>
    %80 = vector.extract_strided_slice %45 {offsets = [0, 8], sizes = [8, 8], strides = [1, 1]} : vector<8x32xbf16> to vector<8x8xbf16>
    %cst_44 = arith.constant dense<0.000000e+00> : vector<8x8xf32>
    %81 = tpu.matmul %79, %80, %cst_44 {dimension_numbers = #tpu.dot_dimension_numbers<[1], [1], [0], [0], [0, 0, 1, 0], [], []>} : vector<8x8xbf16>, vector<8x8xbf16>, vector<8x8xf32> -> vector<8x8xf32>
    %cst_45 = arith.constant 0.353553385 : f32
    %82 = vector.broadcast %cst_45 : f32 to vector<8x8xf32>
    %83 = arith.mulf %81, %82 : vector<8x8xf32>
    %84 = vector.broadcast %53 : vector<1x8xf32> to vector<8x8xf32>
    %85 = arith.addf %83, %84 : vector<8x8xf32>
    %cst_46 = arith.constant dense<0xFF800000> : vector<8xf32>
    %86 = vector.multi_reduction <maximumf>, %85, %cst_46 [1] : vector<8x8xf32> to vector<8xf32>
    %87 = vector.shape_cast %86 : vector<8xf32> to vector<8x1xf32>
    %88 = vector.broadcast %87 : vector<8x1xf32> to vector<8x8xf32>
    %89 = arith.subf %85, %88 : vector<8x8xf32>
    %90 = math.exp %89 : vector<8x8xf32>
    %cst_47 = arith.constant dense<0.000000e+00> : vector<8xf32>
    %91 = vector.multi_reduction <add>, %90, %cst_47 [1] : vector<8x8xf32> to vector<8xf32>
    %92 = vector.shape_cast %91 : vector<8xf32> to vector<8x1xf32>
    %93 = tpu.reciprocal %92 {approx = true} : vector<8x1xf32> -> vector<8x1xf32>
    %94 = vector.broadcast %93 : vector<8x1xf32> to vector<8x8xf32>
    %95 = arith.mulf %90, %94 : vector<8x8xf32>
    %96 = arith.truncf %95 : vector<8x8xf32> to vector<8x8xbf16>
    %97 = vector.extract_strided_slice %46 {offsets = [0, 8], sizes = [8, 8], strides = [1, 1]} : vector<8x32xbf16> to vector<8x8xbf16>
    %cst_48 = arith.constant dense<0.000000e+00> : vector<8x8xf32>
    %98 = tpu.matmul %96, %97, %cst_48 {dimension_numbers = #tpu.dot_dimension_numbers<[1], [0], [0], [1], [0, 0, 1, 1], [], []>} : vector<8x8xbf16>, vector<8x8xbf16>, vector<8x8xf32> -> vector<8x8xf32>
    %99 = arith.truncf %98 : vector<8x8xf32> to vector<8x8xbf16>
    %100 = vector.extract_strided_slice %5 {offsets = [8, 0], sizes = [8, 32], strides = [1, 1]} : vector<32x32xbf16> to vector<8x32xbf16>
    %cst_49 = arith.constant dense<0.000000e+00> : vector<8x32xf32>
    %101 = tpu.matmul %99, %100, %cst_49 {dimension_numbers = #tpu.dot_dimension_numbers<[1], [0], [0], [1], [0, 0, 1, 1], [], []>} : vector<8x8xbf16>, vector<8x32xbf16>, vector<8x32xf32> -> vector<8x32xf32>
    %102 = arith.addf %78, %101 : vector<8x32xf32>
    %103 = vector.extract_strided_slice %44 {offsets = [0, 16], sizes = [8, 8], strides = [1, 1]} : vector<8x32xbf16> to vector<8x8xbf16>
    %104 = vector.extract_strided_slice %45 {offsets = [0, 16], sizes = [8, 8], strides = [1, 1]} : vector<8x32xbf16> to vector<8x8xbf16>
    %cst_50 = arith.constant dense<0.000000e+00> : vector<8x8xf32>
    %105 = tpu.matmul %103, %104, %cst_50 {dimension_numbers = #tpu.dot_dimension_numbers<[1], [1], [0], [0], [0, 0, 1, 0], [], []>} : vector<8x8xbf16>, vector<8x8xbf16>, vector<8x8xf32> -> vector<8x8xf32>
    %cst_51 = arith.constant 0.353553385 : f32
    %106 = vector.broadcast %cst_51 : f32 to vector<8x8xf32>
    %107 = arith.mulf %105, %106 : vector<8x8xf32>
    %108 = vector.broadcast %53 : vector<1x8xf32> to vector<8x8xf32>
    %109 = arith.addf %107, %108 : vector<8x8xf32>
    %cst_52 = arith.constant dense<0xFF800000> : vector<8xf32>
    %110 = vector.multi_reduction <maximumf>, %109, %cst_52 [1] : vector<8x8xf32> to vector<8xf32>
    %111 = vector.shape_cast %110 : vector<8xf32> to vector<8x1xf32>
    %112 = vector.broadcast %111 : vector<8x1xf32> to vector<8x8xf32>
    %113 = arith.subf %109, %112 : vector<8x8xf32>
    %114 = math.exp %113 : vector<8x8xf32>
    %cst_53 = arith.constant dense<0.000000e+00> : vector<8xf32>
    %115 = vector.multi_reduction <add>, %114, %cst_53 [1] : vector<8x8xf32> to vector<8xf32>
    %116 = vector.shape_cast %115 : vector<8xf32> to vector<8x1xf32>
    %117 = tpu.reciprocal %116 {approx = true} : vector<8x1xf32> -> vector<8x1xf32>
    %118 = vector.broadcast %117 : vector<8x1xf32> to vector<8x8xf32>
    %119 = arith.mulf %114, %118 : vector<8x8xf32>
    %120 = arith.truncf %119 : vector<8x8xf32> to vector<8x8xbf16>
    %121 = vector.extract_strided_slice %46 {offsets = [0, 16], sizes = [8, 8], strides = [1, 1]} : vector<8x32xbf16> to vector<8x8xbf16>
    %cst_54 = arith.constant dense<0.000000e+00> : vector<8x8xf32>
    %122 = tpu.matmul %120, %121, %cst_54 {dimension_numbers = #tpu.dot_dimension_numbers<[1], [0], [0], [1], [0, 0, 1, 1], [], []>} : vector<8x8xbf16>, vector<8x8xbf16>, vector<8x8xf32> -> vector<8x8xf32>
    %123 = arith.truncf %122 : vector<8x8xf32> to vector<8x8xbf16>
    %124 = vector.extract_strided_slice %5 {offsets = [16, 0], sizes = [8, 32], strides = [1, 1]} : vector<32x32xbf16> to vector<8x32xbf16>
    %cst_55 = arith.constant dense<0.000000e+00> : vector<8x32xf32>
    %125 = tpu.matmul %123, %124, %cst_55 {dimension_numbers = #tpu.dot_dimension_numbers<[1], [0], [0], [1], [0, 0, 1, 1], [], []>} : vector<8x8xbf16>, vector<8x32xbf16>, vector<8x32xf32> -> vector<8x32xf32>
    %126 = arith.addf %102, %125 : vector<8x32xf32>
    %127 = vector.extract_strided_slice %44 {offsets = [0, 24], sizes = [8, 8], strides = [1, 1]} : vector<8x32xbf16> to vector<8x8xbf16>
    %128 = vector.extract_strided_slice %45 {offsets = [0, 24], sizes = [8, 8], strides = [1, 1]} : vector<8x32xbf16> to vector<8x8xbf16>
    %cst_56 = arith.constant dense<0.000000e+00> : vector<8x8xf32>
    %129 = tpu.matmul %127, %128, %cst_56 {dimension_numbers = #tpu.dot_dimension_numbers<[1], [1], [0], [0], [0, 0, 1, 0], [], []>} : vector<8x8xbf16>, vector<8x8xbf16>, vector<8x8xf32> -> vector<8x8xf32>
    %cst_57 = arith.constant 0.353553385 : f32
    %130 = vector.broadcast %cst_57 : f32 to vector<8x8xf32>
    %131 = arith.mulf %129, %130 : vector<8x8xf32>
    %132 = vector.broadcast %53 : vector<1x8xf32> to vector<8x8xf32>
    %133 = arith.addf %131, %132 : vector<8x8xf32>
    %cst_58 = arith.constant dense<0xFF800000> : vector<8xf32>
    %134 = vector.multi_reduction <maximumf>, %133, %cst_58 [1] : vector<8x8xf32> to vector<8xf32>
    %135 = vector.shape_cast %134 : vector<8xf32> to vector<8x1xf32>
    %136 = vector.broadcast %135 : vector<8x1xf32> to vector<8x8xf32>
    %137 = arith.subf %133, %136 : vector<8x8xf32>
    %138 = math.exp %137 : vector<8x8xf32>
    %cst_59 = arith.constant dense<0.000000e+00> : vector<8xf32>
    %139 = vector.multi_reduction <add>, %138, %cst_59 [1] : vector<8x8xf32> to vector<8xf32>
    %140 = vector.shape_cast %139 : vector<8xf32> to vector<8x1xf32>
    %141 = tpu.reciprocal %140 {approx = true} : vector<8x1xf32> -> vector<8x1xf32>
    %142 = vector.broadcast %141 : vector<8x1xf32> to vector<8x8xf32>
    %143 = arith.mulf %138, %142 : vector<8x8xf32>
    %144 = arith.truncf %143 : vector<8x8xf32> to vector<8x8xbf16>
    %145 = vector.extract_strided_slice %46 {offsets = [0, 24], sizes = [8, 8], strides = [1, 1]} : vector<8x32xbf16> to vector<8x8xbf16>
    %cst_60 = arith.constant dense<0.000000e+00> : vector<8x8xf32>
    %146 = tpu.matmul %144, %145, %cst_60 {dimension_numbers = #tpu.dot_dimension_numbers<[1], [0], [0], [1], [0, 0, 1, 1], [], []>} : vector<8x8xbf16>, vector<8x8xbf16>, vector<8x8xf32> -> vector<8x8xf32>
    %147 = arith.truncf %146 : vector<8x8xf32> to vector<8x8xbf16>
    %148 = vector.extract_strided_slice %5 {offsets = [24, 0], sizes = [8, 32], strides = [1, 1]} : vector<32x32xbf16> to vector<8x32xbf16>
    %cst_61 = arith.constant dense<0.000000e+00> : vector<8x32xf32>
    %149 = tpu.matmul %147, %148, %cst_61 {dimension_numbers = #tpu.dot_dimension_numbers<[1], [0], [0], [1], [0, 0, 1, 1], [], []>} : vector<8x8xbf16>, vector<8x32xbf16>, vector<8x32xf32> -> vector<8x32xf32>
    %150 = arith.addf %126, %149 : vector<8x32xf32>
    %151 = arith.addf %1, %150 : vector<8x32xf32>
    %c0_62 = arith.constant 0 : index
    %c0_63 = arith.constant 0 : index
    %152 = vector.load %arg12[%c0_62, %c0_63] : memref<1x32xf32, #tpu.memory_space<vmem>>, vector<1x32xf32>
    %153 = vector.broadcast %152 : vector<1x32xf32> to vector<8x32xf32>
    %154 = arith.addf %151, %153 : vector<8x32xf32>
    %c0_64 = arith.constant 0 : index
    %c0_65 = arith.constant 0 : index
    %155 = vector.load %arg13[%c0_64, %c0_65] : memref<1x32xf32, #tpu.memory_space<vmem>>, vector<1x32xf32>
    %c0_66 = arith.constant 0 : index
    %c0_67 = arith.constant 0 : index
    %156 = vector.load %arg14[%c0_66, %c0_67] : memref<1x32xf32, #tpu.memory_space<vmem>>, vector<1x32xf32>
    %cst_68 = arith.constant dense<0.000000e+00> : vector<8xf32>
    %157 = vector.multi_reduction <add>, %154, %cst_68 [1] : vector<8x32xf32> to vector<8xf32>
    %158 = vector.shape_cast %157 : vector<8xf32> to vector<8x1xf32>
    %cst_69 = arith.constant 3.200000e+01 : f32
    %159 = vector.broadcast %cst_69 : f32 to vector<8x1xf32>
    %160 = arith.divf %158, %159 : vector<8x1xf32>
    %161 = vector.broadcast %160 : vector<8x1xf32> to vector<8x32xf32>
    %162 = arith.subf %154, %161 : vector<8x32xf32>
    %163 = arith.mulf %162, %162 : vector<8x32xf32>
    %cst_70 = arith.constant dense<0.000000e+00> : vector<8xf32>
    %164 = vector.multi_reduction <add>, %163, %cst_70 [1] : vector<8x32xf32> to vector<8xf32>
    %165 = vector.shape_cast %164 : vector<8xf32> to vector<8x1xf32>
    %cst_71 = arith.constant 0.0322580636 : f32
    %166 = vector.broadcast %cst_71 : f32 to vector<8x1xf32>
    %167 = arith.mulf %165, %166 : vector<8x1xf32>
    %168 = math.sqrt %167 : vector<8x1xf32>
    %cst_72 = arith.constant 9.99999997E-7 : f32
    %169 = vector.broadcast %cst_72 : f32 to vector<8x1xf32>
    %170 = arith.addf %168, %169 : vector<8x1xf32>
    %171 = tpu.reciprocal %170 {approx = true} : vector<8x1xf32> -> vector<8x1xf32>
    %172 = vector.broadcast %155 : vector<1x32xf32> to vector<8x32xf32>
    %173 = arith.mulf %172, %162 : vector<8x32xf32>
    %174 = vector.broadcast %171 : vector<8x1xf32> to vector<8x32xf32>
    %175 = arith.mulf %173, %174 : vector<8x32xf32>
    %176 = vector.broadcast %156 : vector<1x32xf32> to vector<8x32xf32>
    %177 = arith.addf %175, %176 : vector<8x32xf32>
    %178 = arith.truncf %177 : vector<8x32xf32> to vector<8x32xbf16>
    %cst_73 = arith.constant dense<0.000000e+00> : vector<8x64xf32>
    %179 = tpu.matmul %178, %6, %cst_73 {dimension_numbers = #tpu.dot_dimension_numbers<[1], [0], [0], [1], [0, 0, 1, 1], [], []>} : vector<8x32xbf16>, vector<32x64xbf16>, vector<8x64xf32> -> vector<8x64xf32>
    %c0_74 = arith.constant 0 : index
    %c0_75 = arith.constant 0 : index
    %180 = vector.load %arg16[%c0_74, %c0_75] : memref<1x64xf32, #tpu.memory_space<vmem>>, vector<1x64xf32>
    %181 = vector.broadcast %180 : vector<1x64xf32> to vector<8x64xf32>
    %182 = arith.addf %179, %181 : vector<8x64xf32>
    %cst_76 = arith.constant 0.000000e+00 : f32
    %183 = vector.broadcast %cst_76 : f32 to vector<8x64xf32>
    %184 = arith.maximumf %182, %183 : vector<8x64xf32>
    %185 = arith.truncf %184 : vector<8x64xf32> to vector<8x64xbf16>
    %cst_77 = arith.constant dense<0.000000e+00> : vector<8x32xf32>
    %186 = tpu.matmul %185, %7, %cst_77 {dimension_numbers = #tpu.dot_dimension_numbers<[1], [0], [0], [1], [0, 0, 1, 1], [], []>} : vector<8x64xbf16>, vector<64x32xbf16>, vector<8x32xf32> -> vector<8x32xf32>
    %c0_78 = arith.constant 0 : index
    %c0_79 = arith.constant 0 : index
    %187 = vector.load %arg18[%c0_78, %c0_79] : memref<1x32xf32, #tpu.memory_space<vmem>>, vector<1x32xf32>
    %188 = vector.broadcast %187 : vector<1x32xf32> to vector<8x32xf32>
    %189 = arith.addf %186, %188 : vector<8x32xf32>
    %190 = arith.addf %154, %189 : vector<8x32xf32>
    %191 = vector.shape_cast %190 : vector<8x32xf32> to vector<1x8x32xf32>
    %c0_80 = arith.constant 0 : index
    %c0_81 = arith.constant 0 : index
    %c0_82 = arith.constant 0 : index
    %192 = vector.load %arg19[%c0_80, %c0_81, %c0_82] : memref<1x8x32xf32, #tpu.memory_space<vmem>>, vector<1x8x32xf32>
    tpu.vector_store %arg19[%c0_80, %c0_81, %c0_82], %191 {strides = array<i32>} : memref<1x8x32xf32, #tpu.memory_space<vmem>>, vector<1x8x32xf32>,
    return
  }
  func.func @transform_0(%arg0: i32) -> (i32, i32, i32) {
    %c0_i32 = arith.constant 0 : i32
    %c0_i32_0 = arith.constant 0 : i32
    %c0_i32_1 = arith.constant 0 : i32
    return %arg0, %c0_i32, %c0_i32_0 : i32, i32, i32
  }
  func.func @transform_1(%arg0: i32) -> (i32, i32, i32) {
    %c0_i32 = arith.constant 0 : i32
    %c0_i32_0 = arith.constant 0 : i32
    %c0_i32_1 = arith.constant 0 : i32
    return %arg0, %c0_i32, %c0_i32_0 : i32, i32, i32
  }
  func.func @transform_2(%arg0: i32) -> (i32, i32) {
    %c0_i32 = arith.constant 0 : i32
    %c0_i32_0 = arith.constant 0 : i32
    %c0_i32_1 = arith.constant 0 : i32
    return %c0_i32, %c0_i32_0 : i32, i32
  }
  func.func @transform_3(%arg0: i32) -> (i32, i32) {
    %c0_i32 = arith.constant 0 : i32
    %c0_i32_0 = arith.constant 0 : i32
    %c0_i32_1 = arith.constant 0 : i32
    return %c0_i32, %c0_i32_0 : i32, i32
  }
  func.func @transform_4(%arg0: i32) -> (i32, i32) {
    %c0_i32 = arith.constant 0 : i32
    %c0_i32_0 = arith.constant 0 : i32
    %c0_i32_1 = arith.constant 0 : i32
    return %c0_i32, %c0_i32_0 : i32, i32
  }
  func.func @transform_5(%arg0: i32) -> (i32, i32) {
    %c0_i32 = arith.constant 0 : i32
    %c0_i32_0 = arith.constant 0 : i32
    %c0_i32_1 = arith.constant 0 : i32
    return %c0_i32, %c0_i32_0 : i32, i32
  }
  func.func @transform_6(%arg0: i32) -> (i32, i32) {
    %c0_i32 = arith.constant 0 : i32
    %c0_i32_0 = arith.constant 0 : i32
    %c0_i32_1 = arith.constant 0 : i32
    return %c0_i32, %c0_i32_0 : i32, i32
  }
  func.func @transform_7(%arg0: i32) -> (i32, i32) {
    %c0_i32 = arith.constant 0 : i32
    %c0_i32_0 = arith.constant 0 : i32
    %c0_i32_1 = arith.constant 0 : i32
    return %c0_i32, %c0_i32_0 : i32, i32
  }
  func.func @transform_8(%arg0: i32) -> (i32, i32) {
    %c0_i32 = arith.constant 0 : i32
    %c0_i32_0 = arith.constant 0 : i32
    %c0_i32_1 = arith.constant 0 : i32
    return %c0_i32, %c0_i32_0 : i32, i32
  }
  func.func @transform_9(%arg0: i32) -> (i32, i32) {
    %c0_i32 = arith.constant 0 : i32
    %c0_i32_0 = arith.constant 0 : i32
    %c0_i32_1 = arith.constant 0 : i32
    return %c0_i32, %c0_i32_0 : i32, i32
  }
  func.func @transform_10(%arg0: i32) -> (i32, i32) {
    %c0_i32 = arith.constant 0 : i32
    %c0_i32_0 = arith.constant 0 : i32
    %c0_i32_1 = arith.constant 0 : i32
    return %c0_i32, %c0_i32_0 : i32, i32
  }
  func.func @transform_11(%arg0: i32) -> (i32, i32) {
    %c0_i32 = arith.constant 0 : i32
    %c0_i32_0 = arith.constant 0 : i32
    %c0_i32_1 = arith.constant 0 : i32
    return %c0_i32, %c0_i32_0 : i32, i32
  }
  func.func @transform_12(%arg0: i32) -> (i32, i32) {
    %c0_i32 = arith.constant 0 : i32
    %c0_i32_0 = arith.constant 0 : i32
    %c0_i32_1 = arith.constant 0 : i32
    return %c0_i32, %c0_i32_0 : i32, i32
  }
  func.func @transform_13(%arg0: i32) -> (i32, i32) {
    %c0_i32 = arith.constant 0 : i32
    %c0_i32_0 = arith.constant 0 : i32
    %c0_i32_1 = arith.constant 0 : i32
    return %c0_i32, %c0_i32_0 : i32, i32
  }
  func.func @transform_14(%arg0: i32) -> (i32, i32) {
    %c0_i32 = arith.constant 0 : i32
    %c0_i32_0 = arith.constant 0 : i32
    %c0_i32_1 = arith.constant 0 : i32
    return %c0_i32, %c0_i32_0 : i32, i32
  }
  func.func @transform_15(%arg0: i32) -> (i32, i32) {
    %c0_i32 = arith.constant 0 : i32
    %c0_i32_0 = arith.constant 0 : i32
    %c0_i32_1 = arith.constant 0 : i32
    return %c0_i32, %c0_i32_0 : i32, i32
  }
  func.func @transform_16(%arg0: i32) -> (i32, i32) {
    %c0_i32 = arith.constant 0 : i32
    %c0_i32_0 = arith.constant 0 : i32
    %c0_i32_1 = arith.constant 0 : i32
    return %c0_i32, %c0_i32_0 : i32, i32
  }
  func.func @transform_17(%arg0: i32) -> (i32, i32) {
    %c0_i32 = arith.constant 0 : i32
    %c0_i32_0 = arith.constant 0 : i32
    %c0_i32_1 = arith.constant 0 : i32
    return %c0_i32, %c0_i32_0 : i32, i32
  }
  func.func @transform_18(%arg0: i32) -> (i32, i32, i32) {
    %c0_i32 = arith.constant 0 : i32
    %c0_i32_0 = arith.constant 0 : i32
    %c0_i32_1 = arith.constant 0 : i32
    return %arg0, %c0_i32, %c0_i32_0 : i32, i32, i32
  }
}

</mosaic_0001>

<llo_original>
// kernel: tpu_custom_call.1
$region0: #{tpu_custom_call.1}
  #allocation0 [shape = 'u32[]', space=smem, size = 0x4, offset = 0x4, fixed_abs, tag = 'smem constant byte address 0x4 - core index']
  #allocation1 [shape = 'u32[144,128]{1,0:T(1,128)}', space=vmem, size = 0x12000, scoped, tag = 'internal scratch']
  %s0 = inlined_call_operand.vmem [shape: f32[2,8,32], index: 0, kind: input, shape index: {}]
  %s1 = inlined_call_operand.hbm [shape: f32[2,1,8], index: 1, kind: input, shape index: {}]
  %s2 = inlined_call_operand.hbm [shape: f32[1,32], index: 2, kind: input, shape index: {}]
  %s3 = inlined_call_operand.hbm [shape: f32[1,32], index: 3, kind: input, shape index: {}]
  %s4 = inlined_call_operand.vmem [shape: bf16[32,32], index: 4, kind: input, shape index: {}]
  %s5 = inlined_call_operand.hbm [shape: f32[1,32], index: 5, kind: input, shape index: {}]
  %s6 = inlined_call_operand.vmem [shape: bf16[32,32], index: 6, kind: input, shape index: {}]
  %s7 = inlined_call_operand.hbm [shape: f32[1,32], index: 7, kind: input, shape index: {}]
  %s8 = inlined_call_operand.hbm [shape: bf16[32,32], index: 8, kind: input, shape index: {}]
  %s9 = inlined_call_operand.hbm [shape: f32[1,32], index: 9, kind: input, shape index: {}]
  %s10 = inlined_call_operand.vmem [shape: bf16[32,32], index: 10, kind: input, shape index: {}]
  %s11 = inlined_call_operand.vmem [shape: f32[1,32], index: 11, kind: input, shape index: {}]
  %s12 = inlined_call_operand.vmem [shape: f32[1,32], index: 12, kind: input, shape index: {}]
  %s13 = inlined_call_operand.vmem [shape: f32[1,32], index: 13, kind: input, shape index: {}]
  %s14 = inlined_call_operand.hbm [shape: bf16[32,64], index: 14, kind: input, shape index: {}]
  %s15 = inlined_call_operand.vmem [shape: f32[1,64], index: 15, kind: input, shape index: {}]
  %s16 = inlined_call_operand.vmem [shape: bf16[64,32], index: 16, kind: input, shape index: {}]
  %s17 = inlined_call_operand.vmem [shape: f32[1,32], index: 17, kind: input, shape index: {}]
  %s18 = inlined_call_operand.hbm [shape: f32[2,8,32], index: 18, kind: output, shape index: {}]
  %s19 = sld [smem:[#allocation0]]
  $region137: #{tpu_custom_call.1} parent=0
    _
  %s21 = ssub.s32 1, %s19
  %s22 = scalar_select 0, %s21, %s19
  $region1: #{tpu_custom_call.1} parent=0
    #allocation2 [shape = 'u8[1024]{0}', space=vmem, size = 0x400, scoped, tag = 'input window, operand 1']
    #allocation3 [shape = 's32[2]{0}', space=sflag, size = 0x8, scoped, tag = 'scoped memory for tpu_custom_call.1']
    #allocation4 [shape = 's32[2]{0}', space=sflag, size = 0x8, scoped, tag = 'scoped memory for tpu_custom_call.1']
    #allocation5 [shape = 'u8[512]{0}', space=vmem, size = 0x400, scoped, tag = 'input window, operand 2, single buffered']
    #allocation6 [shape = 's32[1]{0}', space=sflag, size = 0x4, scoped, tag = 'scoped memory for tpu_custom_call.1']
    #allocation7 [shape = 'u8[512]{0}', space=vmem, size = 0x400, scoped, tag = 'input window, operand 3, single buffered']
    #allocation8 [shape = 'u8[512]{0}', space=vmem, size = 0x400, scoped, tag = 'input window, operand 5, single buffered']
    #allocation9 [shape = 's32[1]{0}', space=sflag, size = 0x4, scoped, tag = 'scoped memory for tpu_custom_call.1']
    #allocation10 [shape = 'u8[512]{0}', space=vmem, size = 0x400, scoped, tag = 'input window, operand 7, single buffered']
    #allocation11 [shape = 'u8[8192]{0}', space=vmem, size = 0x2000, scoped, tag = 'input window, operand 8, single buffered']
    #allocation12 [shape = 's32[1]{0}', space=sflag, size = 0x4, scoped, tag = 'scoped memory for tpu_custom_call.1']
    #allocation13 [shape = 'u8[512]{0}', space=vmem, size = 0x400, scoped, tag = 'input window, operand 9, single buffered']
    #allocation14 [shape = 'u8[8192]{0}', space=vmem, size = 0x2000, scoped, tag = 'input window, operand 14, single buffered']
    #allocation15 [shape = 's32[1]{0}', space=sflag, size = 0x4, scoped, tag = 'scoped memory for tpu_custom_call.1']
    #allocation16 [shape = 'u8[8192]{0}', space=vmem, size = 0x2000, scoped, tag = 'output window, operand 0']
    %23 = vsyncpa [#allocation3], 0
    %s24 = scalar_lea.sflag [#allocation3], 1
    %25 = vsyncpa %s24, 0
    %26 = vsyncpa [#allocation6], 0
    %27 = vsyncpa [#allocation9], 0
    %28 = vsyncpa [#allocation12], 0
    %29 = vsyncpa [#allocation15], 0
    %30 = vsyncpa [#allocation4], 0
    %s31 = scalar_lea.sflag [#allocation4], 1
    %32 = vsyncpa %s31, 0
    loop: start=0, step=1, limit=4
    $region2: #{tpu_custom_call.1} parent=1 // loop_pre_header
      _
    $region3: #{tpu_custom_call.1} parent=1 // loop_header
      %s34 = sphi 0, %s38
      %p35 = scmp.ge.s32.totalorder %s34, 4
      %s44 = sphi 0, %s46
      %s47 = sphi 0, %s44
      %s48 = sphi 0, %s47
      %s64 = sphi 0, %s48
      %s70 = sphi 0, %s72
      %s73 = sphi 0, %s70
      %s74 = sphi 0, %s73
      %s90 = sphi 0, %s74
      %s94 = sphi 0, %s94
      %s96 = sphi 0, %s94
      %s97 = sphi 0, %s96
      %s111 = sphi 0, %s97
      %s115 = sphi 0, %s115
      %s117 = sphi 0, %s115
      %s118 = sphi 0, %s117
      %s132 = sphi 0, %s118
      %s136 = sphi 0, %s136
      %s138 = sphi 0, %s136
      %s139 = sphi 0, %s138
      %s153 = sphi 0, %s139
      %s157 = sphi 0, %s157
      %s159 = sphi 0, %s157
      %s160 = sphi 0, %s159
      %s174 = sphi 0, %s160
      %s178 = sphi 0, %s178
      %s180 = sphi 0, %s178
      %s181 = sphi 0, %s180
      %s195 = sphi 0, %s181
      %s199 = sphi 0, %s199
      %s201 = sphi 0, %s199
      %s202 = sphi 0, %s201
      %s216 = sphi 0, %s202
      %s220 = sphi 0, %s220
      %s222 = sphi 0, %s220
      %s223 = sphi 0, %s222
      %s237 = sphi 0, %s223
      %s241 = sphi 0, %s241
      %s243 = sphi 0, %s241
      %s244 = sphi 0, %s243
      %s258 = sphi 0, %s244
      %s262 = sphi 0, %s262
      %s264 = sphi 0, %s262
      %s265 = sphi 0, %s264
      %s279 = sphi 0, %s265
      %s283 = sphi 0, %s283
      %s285 = sphi 0, %s283
      %s286 = sphi 0, %s285
      %s300 = sphi 0, %s286
      %s304 = sphi 0, %s304
      %s306 = sphi 0, %s304
      %s307 = sphi 0, %s306
      %s321 = sphi 0, %s307
      %s325 = sphi 0, %s325
      %s327 = sphi 0, %s325
      %s328 = sphi 0, %s327
      %s342 = sphi 0, %s328
      %s346 = sphi 0, %s346
      %s348 = sphi 0, %s346
      %s349 = sphi 0, %s348
      %s363 = sphi 0, %s349
      %s367 = sphi 0, %s367
      %s369 = sphi 0, %s367
      %s370 = sphi 0, %s369
      %s384 = sphi 0, %s370
      %s388 = sphi 0, %s388
      %s390 = sphi 0, %s388
      %s391 = sphi 0, %s390
      %s405 = sphi 0, %s391
      %s409 = sphi 0, %s409
      %s411 = sphi 0, %s409
      %s412 = sphi 0, %s411
      %s426 = sphi 0, %s412
      %s432 = sphi 0, %s434
      %s435 = sphi 0, %s432
      %s436 = sphi 0, %s435
      %s452 = sphi 0, %s436
    $region4: #{tpu_custom_call.1} parent=1 // loop_header_branch
      %37 = sbr.rel (%p35) target = $region8
    $region5: #{tpu_custom_call.1} parent=1 // loop_body
      %s39 = ssub.s32 %s34, 1
      %s40 = ssub.s32 %s34, 2
      %s41 = sadd.s32 %s34, 1
      %s42 = ssub.s32 %s34, %s41
      %p43 = scmp.eq.s32.totalorder %s42, 0
      %s45 = sadd.s32 %s44, 1
      %s46 = scalar_select %p43, %s44, %s45
      %p49 = pneg %p43
      %p50 = scmp.eq.s32.totalorder %s34, 1
      %p51 = por %p49, %p50
      %p52 = scmp.ne.s32.totalorder %s44, %s47
      %p53 = scmp.eq.s32.totalorder %s34, 0
      %p54 = por %p52, %p53
      %p55 = scmp.ne.s32.totalorder %s44, %s47
      %p56 = scmp.eq.s32.totalorder %s39, 1
      %p57 = por %p55, %p56
      %p58 = scmp.ne.s32.totalorder %s47, %s48
      %p59 = scmp.eq.s32.totalorder %s39, 0
      %p60 = por %p58, %p59
      %p61 = scmp.ne.s32.totalorder %s47, %s48
      %p62 = scmp.eq.s32.totalorder %s40, 1
      %p63 = por %p61, %p62
      %p65 = scmp.ne.s32.totalorder %s48, %s64
      %p66 = scmp.eq.s32.totalorder %s40, 0
      %p67 = por %p65, %p66
      %s68 = ssub.s32 %s34, %s41
      %p69 = scmp.eq.s32.totalorder %s68, 0
      %s71 = sadd.s32 %s70, 1
      %s72 = scalar_select %p69, %s70, %s71
      %p75 = pneg %p69
      %p76 = scmp.eq.s32.totalorder %s34, 1
      %p77 = por %p75, %p76
      %p78 = scmp.ne.s32.totalorder %s70, %s73
      %p79 = scmp.eq.s32.totalorder %s34, 0
      %p80 = por %p78, %p79
      %p81 = scmp.ne.s32.totalorder %s70, %s73
      %p82 = scmp.eq.s32.totalorder %s39, 1
      %p83 = por %p81, %p82
      %p84 = scmp.ne.s32.totalorder %s73, %s74
      %p85 = scmp.eq.s32.totalorder %s39, 0
      %p86 = por %p84, %p85
      %p87 = scmp.ne.s32.totalorder %s73, %s74
      %p88 = scmp.eq.s32.totalorder %s40, 1
      %p89 = por %p87, %p88
      %p91 = scmp.ne.s32.totalorder %s74, %s90
      %p92 = scmp.eq.s32.totalorder %s40, 0
      %p93 = por %p91, %p92
      %s95 = sadd.s32 %s94, 1
      %p98 = scmp.eq.s32.totalorder %s34, 1
      %p99 = scmp.ne.s32.totalorder %s94, %s96
      %p100 = scmp.eq.s32.totalorder %s34, 0
      %p101 = por %p99, %p100
      %p102 = scmp.ne.s32.totalorder %s94, %s96
      %p103 = scmp.eq.s32.totalorder %s39, 1
      %p104 = por %p102, %p103
      %p105 = scmp.ne.s32.totalorder %s96, %s97
      %p106 = scmp.eq.s32.totalorder %s39, 0
      %p107 = por %p105, %p106
      %p108 = scmp.ne.s32.totalorder %s96, %s97
      %p109 = scmp.eq.s32.totalorder %s40, 1
      %p110 = por %p108, %p109
      %p112 = scmp.ne.s32.totalorder %s97, %s111
      %p113 = scmp.eq.s32.totalorder %s40, 0
      %p114 = por %p112, %p113
      %s116 = sadd.s32 %s115, 1
      %p119 = scmp.eq.s32.totalorder %s34, 1
      %p120 = scmp.ne.s32.totalorder %s115, %s117
      %p121 = scmp.eq.s32.totalorder %s34, 0
      %p122 = por %p120, %p121
      %p123 = scmp.ne.s32.totalorder %s115, %s117
      %p124 = scmp.eq.s32.totalorder %s39, 1
      %p125 = por %p123, %p124
      %p126 = scmp.ne.s32.totalorder %s117, %s118
      %p127 = scmp.eq.s32.totalorder %s39, 0
      %p128 = por %p126, %p127
      %p129 = scmp.ne.s32.totalorder %s117, %s118
      %p130 = scmp.eq.s32.totalorder %s40, 1
      %p131 = por %p129, %p130
      %p133 = scmp.ne.s32.totalorder %s118, %s132
      %p134 = scmp.eq.s32.totalorder %s40, 0
      %p135 = por %p133, %p134
      %s137 = sadd.s32 %s136, 1
      %p140 = scmp.eq.s32.totalorder %s34, 1
      %p141 = scmp.ne.s32.totalorder %s136, %s138
      %p142 = scmp.eq.s32.totalorder %s34, 0
      %p143 = por %p141, %p142
      %p144 = scmp.ne.s32.totalorder %s136, %s138
      %p145 = scmp.eq.s32.totalorder %s39, 1
      %p146 = por %p144, %p145
      %p147 = scmp.ne.s32.totalorder %s138, %s139
      %p148 = scmp.eq.s32.totalorder %s39, 0
      %p149 = por %p147, %p148
      %p150 = scmp.ne.s32.totalorder %s138, %s139
      %p151 = scmp.eq.s32.totalorder %s40, 1
      %p152 = por %p150, %p151
      %p154 = scmp.ne.s32.totalorder %s139, %s153
      %p155 = scmp.eq.s32.totalorder %s40, 0
      %p156 = por %p154, %p155
      %s158 = sadd.s32 %s157, 1
      %p161 = scmp.eq.s32.totalorder %s34, 1
      %p162 = scmp.ne.s32.totalorder %s157, %s159
      %p163 = scmp.eq.s32.totalorder %s34, 0
      %p164 = por %p162, %p163
      %p165 = scmp.ne.s32.totalorder %s157, %s159
      %p166 = scmp.eq.s32.totalorder %s39, 1
      %p167 = por %p165, %p166
      %p168 = scmp.ne.s32.totalorder %s159, %s160
      %p169 = scmp.eq.s32.totalorder %s39, 0
      %p170 = por %p168, %p169
      %p171 = scmp.ne.s32.totalorder %s159, %s160
      %p172 = scmp.eq.s32.totalorder %s40, 1
      %p173 = por %p171, %p172
      %p175 = scmp.ne.s32.totalorder %s160, %s174
      %p176 = scmp.eq.s32.totalorder %s40, 0
      %p177 = por %p175, %p176
      %s179 = sadd.s32 %s178, 1
      %p182 = scmp.eq.s32.totalorder %s34, 1
      %p183 = scmp.ne.s32.totalorder %s178, %s180
      %p184 = scmp.eq.s32.totalorder %s34, 0
      %p185 = por %p183, %p184
      %p186 = scmp.ne.s32.totalorder %s178, %s180
      %p187 = scmp.eq.s32.totalorder %s39, 1
      %p188 = por %p186, %p187
      %p189 = scmp.ne.s32.totalorder %s180, %s181
      %p190 = scmp.eq.s32.totalorder %s39, 0
      %p191 = por %p189, %p190
      %p192 = scmp.ne.s32.totalorder %s180, %s181
      %p193 = scmp.eq.s32.totalorder %s40, 1
      %p194 = por %p192, %p193
      %p196 = scmp.ne.s32.totalorder %s181, %s195
      %p197 = scmp.eq.s32.totalorder %s40, 0
      %p198 = por %p196, %p197
      %s200 = sadd.s32 %s199, 1
      %p203 = scmp.eq.s32.totalorder %s34, 1
      %p204 = scmp.ne.s32.totalorder %s199, %s201
      %p205 = scmp.eq.s32.totalorder %s34, 0
      %p206 = por %p204, %p205
      %p207 = scmp.ne.s32.totalorder %s199, %s201
      %p208 = scmp.eq.s32.totalorder %s39, 1
      %p209 = por %p207, %p208
      %p210 = scmp.ne.s32.totalorder %s201, %s202
      %p211 = scmp.eq.s32.totalorder %s39, 0
      %p212 = por %p210, %p211
      %p213 = scmp.ne.s32.totalorder %s201, %s202
      %p214 = scmp.eq.s32.totalorder %s40, 1
      %p215 = por %p213, %p214
      %p217 = scmp.ne.s32.totalorder %s202, %s216
      %p218 = scmp.eq.s32.totalorder %s40, 0
      %p219 = por %p217, %p218
      %s221 = sadd.s32 %s220, 1
      %p224 = scmp.eq.s32.totalorder %s34, 1
      %p225 = scmp.ne.s32.totalorder %s220, %s222
      %p226 = scmp.eq.s32.totalorder %s34, 0
      %p227 = por %p225, %p226
      %p228 = scmp.ne.s32.totalorder %s220, %s222
      %p229 = scmp.eq.s32.totalorder %s39, 1
      %p230 = por %p228, %p229
      %p231 = scmp.ne.s32.totalorder %s222, %s223
      %p232 = scmp.eq.s32.totalorder %s39, 0
      %p233 = por %p231, %p232
      %p234 = scmp.ne.s32.totalorder %s222, %s223
      %p235 = scmp.eq.s32.totalorder %s40, 1
      %p236 = por %p234, %p235
      %p238 = scmp.ne.s32.totalorder %s223, %s237
      %p239 = scmp.eq.s32.totalorder %s40, 0
      %p240 = por %p238, %p239
      %s242 = sadd.s32 %s241, 1
      %p245 = scmp.eq.s32.totalorder %s34, 1
      %p246 = scmp.ne.s32.totalorder %s241, %s243
      %p247 = scmp.eq.s32.totalorder %s34, 0
      %p248 = por %p246, %p247
      %p249 = scmp.ne.s32.totalorder %s241, %s243
      %p250 = scmp.eq.s32.totalorder %s39, 1
      %p251 = por %p249, %p250
      %p252 = scmp.ne.s32.totalorder %s243, %s244
      %p253 = scmp.eq.s32.totalorder %s39, 0
      %p254 = por %p252, %p253
      %p255 = scmp.ne.s32.totalorder %s243, %s244
      %p256 = scmp.eq.s32.totalorder %s40, 1
      %p257 = por %p255, %p256
      %p259 = scmp.ne.s32.totalorder %s244, %s258
      %p260 = scmp.eq.s32.totalorder %s40, 0
      %p261 = por %p259, %p260
      %s263 = sadd.s32 %s262, 1
      %p266 = scmp.eq.s32.totalorder %s34, 1
      %p267 = scmp.ne.s32.totalorder %s262, %s264
      %p268 = scmp.eq.s32.totalorder %s34, 0
      %p269 = por %p267, %p268
      %p270 = scmp.ne.s32.totalorder %s262, %s264
      %p271 = scmp.eq.s32.totalorder %s39, 1
      %p272 = por %p270, %p271
      %p273 = scmp.ne.s32.totalorder %s264, %s265
      %p274 = scmp.eq.s32.totalorder %s39, 0
      %p275 = por %p273, %p274
      %p276 = scmp.ne.s32.totalorder %s264, %s265
      %p277 = scmp.eq.s32.totalorder %s40, 1
      %p278 = por %p276, %p277
      %p280 = scmp.ne.s32.totalorder %s265, %s279
      %p281 = scmp.eq.s32.totalorder %s40, 0
      %p282 = por %p280, %p281
      %s284 = sadd.s32 %s283, 1
      %p287 = scmp.eq.s32.totalorder %s34, 1
      %p288 = scmp.ne.s32.totalorder %s283, %s285
      %p289 = scmp.eq.s32.totalorder %s34, 0
      %p290 = por %p288, %p289
      %p291 = scmp.ne.s32.totalorder %s283, %s285
      %p292 = scmp.eq.s32.totalorder %s39, 1
      %p293 = por %p291, %p292
      %p294 = scmp.ne.s32.totalorder %s285, %s286
      %p295 = scmp.eq.s32.totalorder %s39, 0
      %p296 = por %p294, %p295
      %p297 = scmp.ne.s32.totalorder %s285, %s286
      %p298 = scmp.eq.s32.totalorder %s40, 1
      %p299 = por %p297, %p298
      %p301 = scmp.ne.s32.totalorder %s286, %s300
      %p302 = scmp.eq.s32.totalorder %s40, 0
      %p303 = por %p301, %p302
      %s305 = sadd.s32 %s304, 1
      %p308 = scmp.eq.s32.totalorder %s34, 1
      %p309 = scmp.ne.s32.totalorder %s304, %s306
      %p310 = scmp.eq.s32.totalorder %s34, 0
      %p311 = por %p309, %p310
      %p312 = scmp.ne.s32.totalorder %s304, %s306
      %p313 = scmp.eq.s32.totalorder %s39, 1
      %p314 = por %p312, %p313
      %p315 = scmp.ne.s32.totalorder %s306, %s307
      %p316 = scmp.eq.s32.totalorder %s39, 0
      %p317 = por %p315, %p316
      %p318 = scmp.ne.s32.totalorder %s306, %s307
      %p319 = scmp.eq.s32.totalorder %s40, 1
      %p320 = por %p318, %p319
      %p322 = scmp.ne.s32.totalorder %s307, %s321
      %p323 = scmp.eq.s32.totalorder %s40, 0
      %p324 = por %p322, %p323
      %s326 = sadd.s32 %s325, 1
      %p329 = scmp.eq.s32.totalorder %s34, 1
      %p330 = scmp.ne.s32.totalorder %s325, %s327
      %p331 = scmp.eq.s32.totalorder %s34, 0
      %p332 = por %p330, %p331
      %p333 = scmp.ne.s32.totalorder %s325, %s327
      %p334 = scmp.eq.s32.totalorder %s39, 1
      %p335 = por %p333, %p334
      %p336 = scmp.ne.s32.totalorder %s327, %s328
      %p337 = scmp.eq.s32.totalorder %s39, 0
      %p338 = por %p336, %p337
      %p339 = scmp.ne.s32.totalorder %s327, %s328
      %p340 = scmp.eq.s32.totalorder %s40, 1
      %p341 = por %p339, %p340
      %p343 = scmp.ne.s32.totalorder %s328, %s342
      %p344 = scmp.eq.s32.totalorder %s40, 0
      %p345 = por %p343, %p344
      %s347 = sadd.s32 %s346, 1
      %p350 = scmp.eq.s32.totalorder %s34, 1
      %p351 = scmp.ne.s32.totalorder %s346, %s348
      %p352 = scmp.eq.s32.totalorder %s34, 0
      %p353 = por %p351, %p352
      %p354 = scmp.ne.s32.totalorder %s346, %s348
      %p355 = scmp.eq.s32.totalorder %s39, 1
      %p356 = por %p354, %p355
      %p357 = scmp.ne.s32.totalorder %s348, %s349
      %p358 = scmp.eq.s32.totalorder %s39, 0
      %p359 = por %p357, %p358
      %p360 = scmp.ne.s32.totalorder %s348, %s349
      %p361 = scmp.eq.s32.totalorder %s40, 1
      %p362 = por %p360, %p361
      %p364 = scmp.ne.s32.totalorder %s349, %s363
      %p365 = scmp.eq.s32.totalorder %s40, 0
      %p366 = por %p364, %p365
      %s368 = sadd.s32 %s367, 1
      %p371 = scmp.eq.s32.totalorder %s34, 1
      %p372 = scmp.ne.s32.totalorder %s367, %s369
      %p373 = scmp.eq.s32.totalorder %s34, 0
      %p374 = por %p372, %p373
      %p375 = scmp.ne.s32.totalorder %s367, %s369
      %p376 = scmp.eq.s32.totalorder %s39, 1
      %p377 = por %p375, %p376
      %p378 = scmp.ne.s32.totalorder %s369, %s370
      %p379 = scmp.eq.s32.totalorder %s39, 0
      %p380 = por %p378, %p379
      %p381 = scmp.ne.s32.totalorder %s369, %s370
      %p382 = scmp.eq.s32.totalorder %s40, 1
      %p383 = por %p381, %p382
      %p385 = scmp.ne.s32.totalorder %s370, %s384
      %p386 = scmp.eq.s32.totalorder %s40, 0
      %p387 = por %p385, %p386
      %s389 = sadd.s32 %s388, 1
      %p392 = scmp.eq.s32.totalorder %s34, 1
      %p393 = scmp.ne.s32.totalorder %s388, %s390
      %p394 = scmp.eq.s32.totalorder %s34, 0
      %p395 = por %p393, %p394
      %p396 = scmp.ne.s32.totalorder %s388, %s390
      %p397 = scmp.eq.s32.totalorder %s39, 1
      %p398 = por %p396, %p397
      %p399 = scmp.ne.s32.totalorder %s390, %s391
      %p400 = scmp.eq.s32.totalorder %s39, 0
      %p401 = por %p399, %p400
      %p402 = scmp.ne.s32.totalorder %s390, %s391
      %p403 = scmp.eq.s32.totalorder %s40, 1
      %p404 = por %p402, %p403
      %p406 = scmp.ne.s32.totalorder %s391, %s405
      %p407 = scmp.eq.s32.totalorder %s40, 0
      %p408 = por %p406, %p407
      %s410 = sadd.s32 %s409, 1
      %p413 = scmp.eq.s32.totalorder %s34, 1
      %p414 = scmp.ne.s32.totalorder %s409, %s411
      %p415 = scmp.eq.s32.totalorder %s34, 0
      %p416 = por %p414, %p415
      %p417 = scmp.ne.s32.totalorder %s409, %s411
      %p418 = scmp.eq.s32.totalorder %s39, 1
      %p419 = por %p417, %p418
      %p420 = scmp.ne.s32.totalorder %s411, %s412
      %p421 = scmp.eq.s32.totalorder %s39, 0
      %p422 = por %p420, %p421
      %p423 = scmp.ne.s32.totalorder %s411, %s412
      %p424 = scmp.eq.s32.totalorder %s40, 1
      %p425 = por %p423, %p424
      %p427 = scmp.ne.s32.totalorder %s412, %s426
      %p428 = scmp.eq.s32.totalorder %s40, 0
      %p429 = por %p427, %p428
      %s430 = ssub.s32 %s34, %s41
      %p431 = scmp.eq.s32.totalorder %s430, 0
      %s433 = sadd.s32 %s432, 1
      %s434 = scalar_select %p431, %s432, %s433
      %p437 = pneg %p431
      %p438 = scmp.eq.s32.totalorder %s34, 1
      %p439 = por %p437, %p438
      %p440 = scmp.ne.s32.totalorder %s432, %s435
      %p441 = scmp.eq.s32.totalorder %s34, 0
      %p442 = por %p440, %p441
      %p443 = scmp.ne.s32.totalorder %s432, %s435
      %p444 = scmp.eq.s32.totalorder %s39, 1
      %p445 = por %p443, %p444
      %p446 = scmp.ne.s32.totalorder %s435, %s436
      %p447 = scmp.eq.s32.totalorder %s39, 0
      %p448 = por %p446, %p447
      %p449 = scmp.ne.s32.totalorder %s435, %s436
      %p450 = scmp.eq.s32.totalorder %s40, 1
      %p451 = por %p449, %p450
      %p453 = scmp.ne.s32.totalorder %s436, %s452
      %p454 = scmp.eq.s32.totalorder %s40, 0
      %p455 = por %p453, %p454
      %p456 = scmp.le.s32.totalorder 1, %s34
      %p457 = scmp.lt.s32.totalorder %s34, 3
      %p458 = pnand %p456, %p457
      %p459 = pneg %p458
      // Predicated region
      $region9: #{tpu_custom_call.1} parent=5 // pred_check
        _
      $region10: #{tpu_custom_call.1} parent=5 // pred_check_branch
        %461 = sbr.rel (%p458) target = $region12
      $region11: #{tpu_custom_call.1} parent=5 // pred_region
        %s462 = ssub.s32 %s34, 1
        // Predicated region
        $region13: #{tpu_custom_call.1} parent=11 // pred_check
          %p463 = pneg %p107
        $region14: #{tpu_custom_call.1} parent=11 // pred_check_branch
          %465 = sbr.rel (%p463) target = $region16
        $region15: #{tpu_custom_call.1} parent=11 // pred_region
          %s467 = ssub.s32 16, 16
          %468 = vsyncadd [#allocation6], %s467
          %s470 = sshll.u32 [#allocation5], 4
          %s471 = int_to_ptr.vmem [resolvable:$true] %s470
          %473 = dma.hbm_to_vmem [thread:$0]  %s2, 16, %s471, [#allocation6]
        $region16: #{tpu_custom_call.1} parent=11 // pred_fallthru
          _
        // Predicated region
        $region17: #{tpu_custom_call.1} parent=11 // pred_check
          %p474 = pneg %p128
        $region18: #{tpu_custom_call.1} parent=11 // pred_check_branch
          %476 = sbr.rel (%p474) target = $region20
        $region19: #{tpu_custom_call.1} parent=11 // pred_region
          %s478 = ssub.s32 16, 16
          %479 = vsyncadd [#allocation6], %s478
          %s481 = sshll.u32 [#allocation7], 4
          %s482 = int_to_ptr.vmem [resolvable:$true] %s481
          %484 = dma.hbm_to_vmem [thread:$0]  %s3, 16, %s482, [#allocation6]
        $region20: #{tpu_custom_call.1} parent=11 // pred_fallthru
          _
        // Predicated region
        $region21: #{tpu_custom_call.1} parent=11 // pred_check
          %p485 = pneg %p149
        $region22: #{tpu_custom_call.1} parent=11 // pred_check_branch
          %487 = sbr.rel (%p485) target = $region24
        $region23: #{tpu_custom_call.1} parent=11 // pred_region
          _
        $region24: #{tpu_custom_call.1} parent=11 // pred_fallthru
          _
        // Predicated region
        $region25: #{tpu_custom_call.1} parent=11 // pred_check
          %p488 = pneg %p170
        $region26: #{tpu_custom_call.1} parent=11 // pred_check_branch
          %490 = sbr.rel (%p488) target = $region28
        $region27: #{tpu_custom_call.1} parent=11 // pred_region
          %s492 = ssub.s32 16, 16
          %493 = vsyncadd [#allocation9], %s492
          %s495 = sshll.u32 [#allocation8], 4
          %s496 = int_to_ptr.vmem [resolvable:$true] %s495
          %498 = dma.hbm_to_vmem [thread:$0]  %s5, 16, %s496, [#allocation9]
        $region28: #{tpu_custom_call.1} parent=11 // pred_fallthru
          _
        // Predicated region
        $region29: #{tpu_custom_call.1} parent=11 // pred_check
          %p499 = pneg %p191
        $region30: #{tpu_custom_call.1} parent=11 // pred_check_branch
          %501 = sbr.rel (%p499) target = $region32
        $region31: #{tpu_custom_call.1} parent=11 // pred_region
          _
        $region32: #{tpu_custom_call.1} parent=11 // pred_fallthru
          _
        // Predicated region
        $region33: #{tpu_custom_call.1} parent=11 // pred_check
          %p502 = pneg %p212
        $region34: #{tpu_custom_call.1} parent=11 // pred_check_branch
          %504 = sbr.rel (%p502) target = $region36
        $region35: #{tpu_custom_call.1} parent=11 // pred_region
          %s506 = ssub.s32 16, 16
          %507 = vsyncadd [#allocation9], %s506
          %s509 = sshll.u32 [#allocation10], 4
          %s510 = int_to_ptr.vmem [resolvable:$true] %s509
          %512 = dma.hbm_to_vmem [thread:$0]  %s7, 16, %s510, [#allocation9]
        $region36: #{tpu_custom_call.1} parent=11 // pred_fallthru
          _
        // Predicated region
        $region37: #{tpu_custom_call.1} parent=11 // pred_check
          %p513 = pneg %p233
        $region38: #{tpu_custom_call.1} parent=11 // pred_check_branch
          %515 = sbr.rel (%p513) target = $region40
        $region39: #{tpu_custom_call.1} parent=11 // pred_region
          %s517 = ssub.s32 256, 256
          %518 = vsyncadd [#allocation12], %s517
          %s519 = sshll.u32 [#allocation11], 4
          %s520 = int_to_ptr.vmem [resolvable:$true] %s519
          %525 = dma.hbm_to_vmem [thread:$0]  %s8, 256, %s520, [#allocation12], 64, 64, 4
        $region40: #{tpu_custom_call.1} parent=11 // pred_fallthru
          _
        // Predicated region
        $region41: #{tpu_custom_call.1} parent=11 // pred_check
          %p526 = pneg %p254
        $region42: #{tpu_custom_call.1} parent=11 // pred_check_branch
          %528 = sbr.rel (%p526) target = $region44
        $region43: #{tpu_custom_call.1} parent=11 // pred_region
          %s530 = ssub.s32 16, 16
          %531 = vsyncadd [#allocation12], %s530
          %s533 = sshll.u32 [#allocation13], 4
          %s534 = int_to_ptr.vmem [resolvable:$true] %s533
          %536 = dma.hbm_to_vmem [thread:$0]  %s9, 16, %s534, [#allocation12]
        $region44: #{tpu_custom_call.1} parent=11 // pred_fallthru
          _
        // Predicated region
        $region45: #{tpu_custom_call.1} parent=11 // pred_check
          %p537 = pneg %p275
        $region46: #{tpu_custom_call.1} parent=11 // pred_check_branch
          %539 = sbr.rel (%p537) target = $region48
        $region47: #{tpu_custom_call.1} parent=11 // pred_region
          _
        $region48: #{tpu_custom_call.1} parent=11 // pred_fallthru
          _
        // Predicated region
        $region49: #{tpu_custom_call.1} parent=11 // pred_check
          %p540 = pneg %p296
        $region50: #{tpu_custom_call.1} parent=11 // pred_check_branch
          %542 = sbr.rel (%p540) target = $region52
        $region51: #{tpu_custom_call.1} parent=11 // pred_region
          _
        $region52: #{tpu_custom_call.1} parent=11 // pred_fallthru
          _
        // Predicated region
        $region53: #{tpu_custom_call.1} parent=11 // pred_check
          %p543 = pneg %p317
        $region54: #{tpu_custom_call.1} parent=11 // pred_check_branch
          %545 = sbr.rel (%p543) target = $region56
        $region55: #{tpu_custom_call.1} parent=11 // pred_region
          _
        $region56: #{tpu_custom_call.1} parent=11 // pred_fallthru
          _
        // Predicated region
        $region57: #{tpu_custom_call.1} parent=11 // pred_check
          %p546 = pneg %p338
        $region58: #{tpu_custom_call.1} parent=11 // pred_check_branch
          %548 = sbr.rel (%p546) target = $region60
        $region59: #{tpu_custom_call.1} parent=11 // pred_region
          _
        $region60: #{tpu_custom_call.1} parent=11 // pred_fallthru
          _
        // Predicated region
        $region61: #{tpu_custom_call.1} parent=11 // pred_check
          %p549 = pneg %p359
        $region62: #{tpu_custom_call.1} parent=11 // pred_check_branch
          %551 = sbr.rel (%p549) target = $region64
        $region63: #{tpu_custom_call.1} parent=11 // pred_region
          %s553 = ssub.s32 256, 256
          %554 = vsyncadd [#allocation15], %s553
          %s555 = sshll.u32 [#allocation14], 4
          %s556 = int_to_ptr.vmem [resolvable:$true] %s555
          %561 = dma.hbm_to_vmem [thread:$0]  %s14, 256, %s556, [#allocation15], 64, 64, 4
        $region64: #{tpu_custom_call.1} parent=11 // pred_fallthru
          _
        // Predicated region
        $region65: #{tpu_custom_call.1} parent=11 // pred_check
          %p562 = pneg %p380
        $region66: #{tpu_custom_call.1} parent=11 // pred_check_branch
          %564 = sbr.rel (%p562) target = $region68
        $region67: #{tpu_custom_call.1} parent=11 // pred_region
          _
        $region68: #{tpu_custom_call.1} parent=11 // pred_fallthru
          _
        // Predicated region
        $region69: #{tpu_custom_call.1} parent=11 // pred_check
          %p565 = pneg %p401
        $region70: #{tpu_custom_call.1} parent=11 // pred_check_branch
          %567 = sbr.rel (%p565) target = $region72
        $region71: #{tpu_custom_call.1} parent=11 // pred_region
          _
        $region72: #{tpu_custom_call.1} parent=11 // pred_fallthru
          _
        // Predicated region
        $region73: #{tpu_custom_call.1} parent=11 // pred_check
          %p568 = pneg %p422
        $region74: #{tpu_custom_call.1} parent=11 // pred_check_branch
          %570 = sbr.rel (%p568) target = $region76
        $region75: #{tpu_custom_call.1} parent=11 // pred_region
          _
        $region76: #{tpu_custom_call.1} parent=11 // pred_fallthru
          _
      $region12: #{tpu_custom_call.1} parent=5 // pred_fallthru
        _
      %p571 = scmp.lt.s32.totalorder %s34, 2
      // Predicated region
      $region77: #{tpu_custom_call.1} parent=5 // pred_check
        %p572 = pneg %p571
      $region78: #{tpu_custom_call.1} parent=5 // pred_check_branch
        %574 = sbr.rel (%p572) target = $region80
      $region79: #{tpu_custom_call.1} parent=5 // pred_region
        // Predicated region
        $region81: #{tpu_custom_call.1} parent=79 // pred_check
          %p575 = pneg %p54
        $region82: #{tpu_custom_call.1} parent=79 // pred_check_branch
          %577 = sbr.rel (%p575) target = $region84
        $region83: #{tpu_custom_call.1} parent=79 // pred_region
          %p578 = scmp.lt.s32.totalorder %s34, 1
          %s579 = scalar_select %p578, %s34, 1
          %s580 = smul.addr %s579, 8
          %s581 = scalar_lea.vmem %s0, %s580
        $region84: #{tpu_custom_call.1} parent=79 // pred_fallthru
          _
        // Predicated region
        $region85: #{tpu_custom_call.1} parent=79 // pred_check
          %p582 = pneg %p80
        $region86: #{tpu_custom_call.1} parent=79 // pred_check_branch
          %584 = sbr.rel (%p582) target = $region88
        $region87: #{tpu_custom_call.1} parent=79 // pred_region
          %s585 = sand.u32 %s70, 1
          %s586 = scalar_lea.sflag [#allocation3], %s585
          %s587 = sand.u32 %s70, 1
          %s588 = scalar_lea.vmem [#allocation2], %s587
          %s590 = ssub.s32 16, 16
          %591 = vsyncadd %s586, %s590
          %s592 = smul.addr %s34, 16
          %s593 = scalar_lea.hbm %s1, %s592
          %s595 = sshll.u32 %s588, 4
          %s596 = int_to_ptr.vmem [resolvable:$true] %s595
          %598 = dma.hbm_to_vmem [thread:$0]  %s593, 16, %s596, %s586
        $region88: #{tpu_custom_call.1} parent=79 // pred_fallthru
          _
      $region80: #{tpu_custom_call.1} parent=5 // pred_fallthru
        _
      %p599 = scmp.le.s32.totalorder 1, %s34
      %p600 = scmp.lt.s32.totalorder %s34, 3
      %p601 = pnand %p599, %p600
      %p602 = pneg %p601
      // Predicated region
      $region89: #{tpu_custom_call.1} parent=5 // pred_check
        _
      $region90: #{tpu_custom_call.1} parent=5 // pred_check_branch
        %604 = sbr.rel (%p601) target = $region92
      $region91: #{tpu_custom_call.1} parent=5 // pred_region
        %s605 = ssub.s32 %s34, 1
        %s606 = sand.u32 %s73, 1
        %s607 = scalar_lea.sflag [#allocation3], %s606
        %s608 = sand.u32 %s73, 1
        %s609 = scalar_lea.vmem [#allocation2], %s608
        // Predicated region
        $region93: #{tpu_custom_call.1} parent=91 // pred_check
          %p610 = pneg %p86
        $region94: #{tpu_custom_call.1} parent=91 // pred_check_branch
          %612 = sbr.rel (%p610) target = $region96
        $region95: #{tpu_custom_call.1} parent=91 // pred_region
          %613 = dma.done %s607, 16
        $region96: #{tpu_custom_call.1} parent=91 // pred_fallthru
          _
        // Predicated region
        $region97: #{tpu_custom_call.1} parent=91 // pred_check
          %p614 = pneg %p107
        $region98: #{tpu_custom_call.1} parent=91 // pred_check_branch
          %616 = sbr.rel (%p614) target = $region100
        $region99: #{tpu_custom_call.1} parent=91 // pred_region
          %617 = dma.done [#allocation6], 16
        $region100: #{tpu_custom_call.1} parent=91 // pred_fallthru
          _
        // Predicated region
        $region101: #{tpu_custom_call.1} parent=91 // pred_check
          %p618 = pneg %p128
        $region102: #{tpu_custom_call.1} parent=91 // pred_check_branch
          %620 = sbr.rel (%p618) target = $region104
        $region103: #{tpu_custom_call.1} parent=91 // pred_region
          %621 = dma.done [#allocation6], 16
        $region104: #{tpu_custom_call.1} parent=91 // pred_fallthru
          _
        // Predicated region
        $region105: #{tpu_custom_call.1} parent=91 // pred_check
          %p622 = pneg %p170
        $region106: #{tpu_custom_call.1} parent=91 // pred_check_branch
          %624 = sbr.rel (%p622) target = $region108
        $region107: #{tpu_custom_call.1} parent=91 // pred_region
          %625 = dma.done [#allocation9], 16
        $region108: #{tpu_custom_call.1} parent=91 // pred_fallthru
          _
        // Predicated region
        $region109: #{tpu_custom_call.1} parent=91 // pred_check
          %p626 = pneg %p212
        $region110: #{tpu_custom_call.1} parent=91 // pred_check_branch
          %628 = sbr.rel (%p626) target = $region112
        $region111: #{tpu_custom_call.1} parent=91 // pred_region
          %629 = dma.done [#allocation9], 16
        $region112: #{tpu_custom_call.1} parent=91 // pred_fallthru
          _
        // Predicated region
        $region113: #{tpu_custom_call.1} parent=91 // pred_check
          %p630 = pneg %p233
        $region114: #{tpu_custom_call.1} parent=91 // pred_check_branch
          %632 = sbr.rel (%p630) target = $region116
        $region115: #{tpu_custom_call.1} parent=91 // pred_region
          %633 = dma.done [#allocation12], 256
        $region116: #{tpu_custom_call.1} parent=91 // pred_fallthru
          _
        // Predicated region
        $region117: #{tpu_custom_call.1} parent=91 // pred_check
          %p634 = pneg %p254
        $region118: #{tpu_custom_call.1} parent=91 // pred_check_branch
          %636 = sbr.rel (%p634) target = $region120
        $region119: #{tpu_custom_call.1} parent=91 // pred_region
          %637 = dma.done [#allocation12], 16
        $region120: #{tpu_custom_call.1} parent=91 // pred_fallthru
          _
        // Predicated region
        $region121: #{tpu_custom_call.1} parent=91 // pred_check
          %p638 = pneg %p359
        $region122: #{tpu_custom_call.1} parent=91 // pred_check_branch
          %640 = sbr.rel (%p638) target = $region124
        $region123: #{tpu_custom_call.1} parent=91 // pred_region
          %641 = dma.done [#allocation15], 256
        $region124: #{tpu_custom_call.1} parent=91 // pred_fallthru
          _
        %p642 = scmp.lt.s32.totalorder %s39, 1
        %s643 = scalar_select %p642, %s39, 1
        %s644 = smul.addr %s643, 8
        %s645 = scalar_lea.vmem %s0, %s644
        %p646 = pneg %p60
        %p647 = pneg %p57
        %s648 = sand.u32 %s73, 1
        %s649 = scalar_lea.sflag [#allocation3], %s648
        %s650 = sand.u32 %s73, 1
        %s651 = scalar_lea.vmem [#allocation2], %s650
        %p652 = pneg %p86
        %p653 = pneg %p83
        %p654 = pneg %p107
        %p655 = pneg %p104
        %p656 = pneg %p128
        %p657 = pneg %p125
        %p658 = pneg %p149
        %p659 = pneg %p146
        %p660 = pneg %p170
        %p661 = pneg %p167
        %p662 = pneg %p191
        %p663 = pneg %p188
        %p664 = pneg %p212
        %p665 = pneg %p209
        %p666 = pneg %p233
        %p667 = pneg %p230
        %p668 = pneg %p254
        %p669 = pneg %p251
        %p670 = pneg %p275
        %p671 = pneg %p272
        %p672 = pneg %p296
        %p673 = pneg %p293
        %p674 = pneg %p317
        %p675 = pneg %p314
        %p676 = pneg %p338
        %p677 = pneg %p335
        %p678 = pneg %p359
        %p679 = pneg %p356
        %p680 = pneg %p380
        %p681 = pneg %p377
        %p682 = pneg %p401
        %p683 = pneg %p398
        %p684 = pneg %p422
        %p685 = pneg %p419
        %p686 = pneg %p448
        %p687 = pneg %p445
        %s688 = sand.u32 %s435, 1
        %s689 = scalar_lea.sflag [#allocation4], %s688
        %s690 = sand.u32 %s435, 1
        %s691 = smul.addr %s690, 8
        %s692 = scalar_lea.vmem [#allocation16], %s691
        %p693 = scmp.lt.s32.totalorder %s39, 1
        %s694 = scalar_select %p693, %s39, 1
        %s695 = smul.addr %s694, 8
        %s696 = scalar_lea.vmem %s0, %s695
        %v698 = vld [vmem:[%s696] sm:$0xff]
        %v699 = vld [vmem:[%s4] sm:$0xf]
        %v700 = vld [vmem:[%s4 + $0x4] sm:$0xf]
        %v701 = vld [vmem:[%s4 + $0x8] sm:$0xf]
        %v702 = vld [vmem:[%s4 + $0xc] sm:$0xf]
        %v703 = vld [vmem:[%s6] sm:$0xf]
        %v704 = vld [vmem:[%s6 + $0x4] sm:$0xf]
        %v705 = vld [vmem:[%s6 + $0x8] sm:$0xf]
        %v706 = vld [vmem:[%s6 + $0xc] sm:$0xf]
        %v707 = vld [vmem:[#allocation11] sm:$0xf]
        %v708 = vld [vmem:[#allocation11 + $0x4] sm:$0xf]
        %v709 = vld [vmem:[#allocation11 + $0x8] sm:$0xf]
        %v710 = vld [vmem:[#allocation11 + $0xc] sm:$0xf]
        %v711 = vld [vmem:[%s10] sm:$0xf]
        %v712 = vld [vmem:[%s10 + $0x4] sm:$0xf]
        %v713 = vld [vmem:[%s10 + $0x8] sm:$0xf]
        %v714 = vld [vmem:[%s10 + $0xc] sm:$0xf]
        %v715 = vld [vmem:[#allocation14] sm:$0xf]
        %v716 = vld [vmem:[#allocation14 + $0x4] sm:$0xf]
        %v717 = vld [vmem:[#allocation14 + $0x8] sm:$0xf]
        %v718 = vld [vmem:[#allocation14 + $0xc] sm:$0xf]
        %v719 = vld [vmem:[%s16] sm:$0xf]
        %v720 = vld [vmem:[%s16 + $0x4] sm:$0xf]
        %v721 = vld [vmem:[%s16 + $0x8] sm:$0xf]
        %v722 = vld [vmem:[%s16 + $0xc] sm:$0xf]
        %v723 = vld [vmem:[%s16 + $0x10] sm:$0xf]
        %v724 = vld [vmem:[%s16 + $0x14] sm:$0xf]
        %v725 = vld [vmem:[%s16 + $0x18] sm:$0xf]
        %v726 = vld [vmem:[%s16 + $0x1c] sm:$0xf]
        %v727 = vld [vmem:[#allocation5] sm:$0x1]
        %v728 = vld [vmem:[#allocation7] sm:$0x1]
        %vm729 = vcmask 261120
        %v730 = vsel %vm729, %v698, 0.0
        %731 = vadd.xlane.f32.xlu0 %v730
        %v732 = vpop.xlane.xlu0 %731
        %v733 = vrcp.pop 32.0
        %v734 = vmul.f32 %v732, %v733
        %v735 = vsub.f32 %v698, %v734
        %v736 = vmul.f32 %v735, %v735
        %v737 = vsel %vm729, %v736, 0.0
        %738 = vadd.xlane.f32.xlu0 %v737
        %v739 = vpop.xlane.xlu0 %738
        %v740 = vmul.f32 %v739, 0.032258064
        %v741 = vrsqrt.pop %v740
        %v742 = vmul.f32 %v740, %v741
        %vm743 = vcmp.eq.f32.partialorder %v740, inf
        %v744 = vsel %vm743, %v740, %v742
        %vm745 = vcmp.eq.f32.partialorder %v740, 0.0
        %v746 = vand.u32 %v740, 2147483648
        %v747 = vsel %vm745, %v746, %v744
        %v748 = vadd.f32 %v747, 1e-06
        %v749 = vrcp.pop %v748
        %v751 = vlaneseq
        %v752 = vshrl.u32 %v751, 7
        %v753 = vsub.s32 0, %v752
        %v754 = vrot.slane %v727, %v753
        %v756 = vmul.f32 %v754, %v735
        %v757 = vmul.f32 %v756, %v749
        %v759 = vlaneseq
        %v760 = vshrl.u32 %v759, 7
        %v761 = vsub.s32 0, %v760
        %v762 = vrot.slane %v728, %v761
        %v764 = vadd.f32 %v757, %v762
        %v765 = vpack.c.bf16 %v764, %v764
        %v766 = vld [vmem:[#allocation8] sm:$0x1]
        %v768 = vlaneseq
        %v769 = vshrl.u32 %v768, 7
        %v770 = vsub.s32 0, %v769
        %v771 = vrot.slane %v766, %v770
        %v777 = vunpack.c.l.b16 %v699
        %v778 = vunpack.c.l.b16 %v700
        %v779 = vunpack.c.l.b16 %v701
        %v780 = vunpack.c.l.b16 %v702
        %v781 = vpack.c.b16 %v778, %v777
        %v782 = vpack.c.b16 %v780, %v779
        %v786 = vsel %vm729, %v765, 0
        %788 = vmatprep.subr.bf16.mxu0 0
        %789 = vmatpush1.bf16.msra.mxu0 0
        %790 = vmatprep.subr.bf16.mxu0 0
        %791 = vmatpush1.bf16.msra.mxu0 0
        %792 = vmatprep.subr.bf16.mxu0 0
        %793 = vmatpush1.bf16.msra.mxu0 0
        %794 = vmatprep.subr.bf16.mxu0 0
        %795 = vmatpush1.bf16.msra.mxu0 0
        %796 = vmatprep.subr.bf16.mxu0 0
        %797 = vmatpush1.bf16.msra.mxu0 0
        %798 = vmatprep.subr.bf16.mxu0 0
        %799 = vmatpush1.bf16.msra.mxu0 0
        %800 = vmatprep.subr.bf16.mxu0 0
        %801 = vmatpush1.bf16.msra.mxu0 %v782
        %802 = vmatprep.subr.bf16.mxu0 0
        %803 = vmatpush1.bf16.msra.mxu0 %v781
        %804 = vmatprep.subr.bf16.mxu0 0
        %805 = vmatpush2.bf16.msra.mxu0 0
        %806 = vmatprep.subr.bf16.mxu0 0
        %807 = vmatpush2.bf16.msra.mxu0 0
        %808 = vmatprep.subr.bf16.mxu0 0
        %809 = vmatpush2.bf16.msra.mxu0 0
        %810 = vmatprep.subr.bf16.mxu0 0
        %811 = vmatpush2.bf16.msra.mxu0 0
        %812 = vmatprep.subr.bf16.mxu0 0
        %813 = vmatpush2.bf16.msra.mxu0 0
        %814 = vmatprep.subr.bf16.mxu0 0
        %815 = vmatpush2.bf16.msra.mxu0 0
        %816 = vmatprep.subr.bf16.mxu0 0
        %817 = vmatpush2.bf16.msra.mxu0 0
        %818 = vmatprep.subr.bf16.mxu0 0
        %819 = vmatpush2.bf16.msra.mxu0 0
        %820 = vmatprep.mubr.bf16.mxu0 0
        %821 = vmatmul.mubr.bf16.gmra.mxu0 %v786
        %v822 = vpop.f32.mrf.mxu0
        %v823 = vadd.f32 %v771, %v822
        %v824 = vpop.f32.mrf.mxu0
        %v825 = vpop.f32.mrf.mxu0
        %v826 = vpop.f32.mrf.mxu0
        %827 = vdwg.mxu0
        %v828 = vld [vmem:[#allocation10] sm:$0x1]
        %v830 = vlaneseq
        %v831 = vshrl.u32 %v830, 7
        %v832 = vsub.s32 0, %v831
        %v833 = vrot.slane %v828, %v832
        %v839 = vunpack.c.l.b16 %v703
        %v840 = vunpack.c.l.b16 %v704
        %v841 = vunpack.c.l.b16 %v705
        %v842 = vunpack.c.l.b16 %v706
        %v843 = vpack.c.b16 %v840, %v839
        %v844 = vpack.c.b16 %v842, %v841
        %847 = vmatprep.subr.bf16.mxu0 0
        %848 = vmatpush1.bf16.msra.mxu0 0
        %849 = vmatprep.subr.bf16.mxu0 0
        %850 = vmatpush1.bf16.msra.mxu0 0
        %851 = vmatprep.subr.bf16.mxu0 0
        %852 = vmatpush1.bf16.msra.mxu0 0
        %853 = vmatprep.subr.bf16.mxu0 0
        %854 = vmatpush1.bf16.msra.mxu0 0
        %855 = vmatprep.subr.bf16.mxu0 0
        %856 = vmatpush1.bf16.msra.mxu0 0
        %857 = vmatprep.subr.bf16.mxu0 0
        %858 = vmatpush1.bf16.msra.mxu0 0
        %859 = vmatprep.subr.bf16.mxu0 0
        %860 = vmatpush1.bf16.msra.mxu0 %v844
        %861 = vmatprep.subr.bf16.mxu0 0
        %862 = vmatpush1.bf16.msra.mxu0 %v843
        %863 = vmatprep.subr.bf16.mxu0 0
        %864 = vmatpush2.bf16.msra.mxu0 0
        %865 = vmatprep.subr.bf16.mxu0 0
        %866 = vmatpush2.bf16.msra.mxu0 0
        %867 = vmatprep.subr.bf16.mxu0 0
        %868 = vmatpush2.bf16.msra.mxu0 0
        %869 = vmatprep.subr.bf16.mxu0 0
        %870 = vmatpush2.bf16.msra.mxu0 0
        %871 = vmatprep.subr.bf16.mxu0 0
        %872 = vmatpush2.bf16.msra.mxu0 0
        %873 = vmatprep.subr.bf16.mxu0 0
        %874 = vmatpush2.bf16.msra.mxu0 0
        %875 = vmatprep.subr.bf16.mxu0 0
        %876 = vmatpush2.bf16.msra.mxu0 0
        %877 = vmatprep.subr.bf16.mxu0 0
        %878 = vmatpush2.bf16.msra.mxu0 0
        %879 = vmatprep.mubr.bf16.mxu0 0
        %880 = vmatmul.mubr.bf16.gmra.mxu0 %v786
        %v881 = vpop.f32.mrf.mxu0
        %v882 = vadd.f32 %v833, %v881
        %v883 = vpop.f32.mrf.mxu0
        %v884 = vpop.f32.mrf.mxu0
        %v885 = vpop.f32.mrf.mxu0
        %886 = vdwg.mxu0
        %v887 = vld [vmem:[#allocation13] sm:$0x1]
        %v889 = vlaneseq
        %v890 = vshrl.u32 %v889, 7
        %v891 = vsub.s32 0, %v890
        %v892 = vrot.slane %v887, %v891
        %v898 = vunpack.c.l.b16 %v707
        %v899 = vunpack.c.l.b16 %v708
        %v900 = vunpack.c.l.b16 %v709
        %v901 = vunpack.c.l.b16 %v710
        %v902 = vpack.c.b16 %v899, %v898
        %v903 = vpack.c.b16 %v901, %v900
        %906 = vmatprep.subr.bf16.mxu0 0
        %907 = vmatpush1.bf16.msra.mxu0 0
        %908 = vmatprep.subr.bf16.mxu0 0
        %909 = vmatpush1.bf16.msra.mxu0 0
        %910 = vmatprep.subr.bf16.mxu0 0
        %911 = vmatpush1.bf16.msra.mxu0 0
        %912 = vmatprep.subr.bf16.mxu0 0
        %913 = vmatpush1.bf16.msra.mxu0 0
        %914 = vmatprep.subr.bf16.mxu0 0
        %915 = vmatpush1.bf16.msra.mxu0 0
        %916 = vmatprep.subr.bf16.mxu0 0
        %917 = vmatpush1.bf16.msra.mxu0 0
        %918 = vmatprep.subr.bf16.mxu0 0
        %919 = vmatpush1.bf16.msra.mxu0 %v903
        %920 = vmatprep.subr.bf16.mxu0 0
        %921 = vmatpush1.bf16.msra.mxu0 %v902
        %922 = vmatprep.subr.bf16.mxu0 0
        %923 = vmatpush2.bf16.msra.mxu0 0
        %924 = vmatprep.subr.bf16.mxu0 0
        %925 = vmatpush2.bf16.msra.mxu0 0
        %926 = vmatprep.subr.bf16.mxu0 0
        %927 = vmatpush2.bf16.msra.mxu0 0
        %928 = vmatprep.subr.bf16.mxu0 0
        %929 = vmatpush2.bf16.msra.mxu0 0
        %930 = vmatprep.subr.bf16.mxu0 0
        %931 = vmatpush2.bf16.msra.mxu0 0
        %932 = vmatprep.subr.bf16.mxu0 0
        %933 = vmatpush2.bf16.msra.mxu0 0
        %934 = vmatprep.subr.bf16.mxu0 0
        %935 = vmatpush2.bf16.msra.mxu0 0
        %936 = vmatprep.subr.bf16.mxu0 0
        %937 = vmatpush2.bf16.msra.mxu0 0
        %938 = vmatprep.mubr.bf16.mxu0 0
        %939 = vmatmul.mubr.bf16.gmra.mxu0 %v786
        %v940 = vpop.f32.mrf.mxu0
        %v941 = vadd.f32 %v892, %v940
        %v942 = vpop.f32.mrf.mxu0
        %v943 = vpop.f32.mrf.mxu0
        %v944 = vpop.f32.mrf.mxu0
        %945 = vdwg.mxu0
        %v946 = vpack.c.bf16 %v823, %v823
        %v947 = vpack.c.bf16 %v882, %v882
        %v948 = vpack.c.bf16 %v941, %v941
        %v949 = vld [vmem:[%s609] sm:$0x1]
        %vm950 = vcmp.eq.f32.partialorder %v949, 0.0
        %v951 = vsel %vm950, -1e+09, 0.0
        %vm952 = vcmask 64512
        %v954 = vsel %vm952, %v946, 0
        %v957 = vsel %vm952, %v947, 0
        %959 = vmatprep.subr.bf16.mxu0 0
        %960 = vmatpush1.bf16.xpose.msra.mxu0 0
        %961 = vmatprep.subr.bf16.mxu0 0
        %962 = vmatpush1.bf16.xpose.msra.mxu0 0
        %963 = vmatprep.subr.bf16.mxu0 0
        %964 = vmatpush1.bf16.xpose.msra.mxu0 0
        %965 = vmatprep.subr.bf16.mxu0 0
        %966 = vmatpush1.bf16.xpose.msra.mxu0 0
        %967 = vmatprep.subr.bf16.mxu0 0
        %968 = vmatpush1.bf16.xpose.msra.mxu0 0
        %969 = vmatprep.subr.bf16.mxu0 0
        %970 = vmatpush1.bf16.xpose.msra.mxu0 0
        %971 = vmatprep.subr.bf16.mxu0 0
        %972 = vmatpush1.bf16.xpose.msra.mxu0 0
        %973 = vmatprep.subr.bf16.mxu0 0
        %974 = vmatpush1.bf16.xpose.msra.mxu0 %v957
        %975 = vmatprep.subr.bf16.mxu0 0
        %976 = vmatpush2.bf16.xpose.msra.mxu0 0
        %977 = vmatprep.subr.bf16.mxu0 0
        %978 = vmatpush2.bf16.xpose.msra.mxu0 0
        %979 = vmatprep.subr.bf16.mxu0 0
        %980 = vmatpush2.bf16.xpose.msra.mxu0 0
        %981 = vmatprep.subr.bf16.mxu0 0
        %982 = vmatpush2.bf16.xpose.msra.mxu0 0
        %983 = vmatprep.subr.bf16.mxu0 0
        %984 = vmatpush2.bf16.xpose.msra.mxu0 0
        %985 = vmatprep.subr.bf16.mxu0 0
        %986 = vmatpush2.bf16.xpose.msra.mxu0 0
        %987 = vmatprep.subr.bf16.mxu0 0
        %988 = vmatpush2.bf16.xpose.msra.mxu0 0
        %989 = vmatprep.subr.bf16.mxu0 0
        %990 = vmatpush2.bf16.xpose.msra.mxu0 0
        %991 = vmatprep.mubr.bf16.mxu0 0
        %992 = vmatmul.mubr.bf16.gmra.mxu0 %v954
        %v993 = vpop.f32.mrf.mxu0
        %v994 = vadd.f32 0.0, %v993
        %v995 = vpop.f32.mrf.mxu0
        %v996 = vpop.f32.mrf.mxu0
        %v997 = vpop.f32.mrf.mxu0
        %998 = vdwg.mxu0
        %v999 = vmul.f32 %v994, 0.35355338
        %v1001 = vlaneseq
        %v1002 = vshrl.u32 %v1001, 7
        %v1003 = vsub.s32 0, %v1002
        %v1004 = vrot.slane %v951, %v1003
        %v1006 = vadd.f32 %v999, %v1004
        %v1007 = vsel %vm952, %v1006, -inf
        %1008 = vmax.xlane.f32.xlu0 %v1007
        %v1009 = vpop.xlane.xlu0 %1008
        %v1010 = vsub.f32 %v1006, %v1009
        %v1011 = vmul.f32 %v1010, 1.442695
        %v1012 = vpow.pop %v1011
        %v1013 = vsel %vm952, %v1012, 0.0
        %1014 = vadd.xlane.f32.xlu0 %v1013
        %v1015 = vpop.xlane.xlu0 %1014
        %v1016 = vrcp.pop %v1015
        %v1017 = vmul.f32 %v1012, %v1016
        %v1018 = vpack.c.bf16 %v1017, %v1017
        %v1020 = vsel %vm952, %v1018, 0
        %vm1022 = vcmask 1043456
        %v1024 = vsel %vm1022, %v948, 0
        %1026 = vmatprep.subr.bf16.mxu0 0
        %1027 = vmatpush1.bf16.msra.mxu0 0
        %1028 = vmatprep.subr.bf16.mxu0 0
        %1029 = vmatpush1.bf16.msra.mxu0 0
        %1030 = vmatprep.subr.bf16.mxu0 0
        %1031 = vmatpush1.bf16.msra.mxu0 0
        %1032 = vmatprep.subr.bf16.mxu0 0
        %1033 = vmatpush1.bf16.msra.mxu0 0
        %1034 = vmatprep.subr.bf16.mxu0 0
        %1035 = vmatpush1.bf16.msra.mxu0 0
        %1036 = vmatprep.subr.bf16.mxu0 0
        %1037 = vmatpush1.bf16.msra.mxu0 0
        %1038 = vmatprep.subr.bf16.mxu0 0
        %1039 = vmatpush1.bf16.msra.mxu0 0
        %1040 = vmatprep.subr.bf16.mxu0 0
        %1041 = vmatpush1.bf16.msra.mxu0 %v1024
        %1042 = vmatprep.subr.bf16.mxu0 0
        %1043 = vmatpush2.bf16.msra.mxu0 0
        %1044 = vmatprep.subr.bf16.mxu0 0
        %1045 = vmatpush2.bf16.msra.mxu0 0
        %1046 = vmatprep.subr.bf16.mxu0 0
        %1047 = vmatpush2.bf16.msra.mxu0 0
        %1048 = vmatprep.subr.bf16.mxu0 0
        %1049 = vmatpush2.bf16.msra.mxu0 0
        %1050 = vmatprep.subr.bf16.mxu0 0
        %1051 = vmatpush2.bf16.msra.mxu0 0
        %1052 = vmatprep.subr.bf16.mxu0 0
        %1053 = vmatpush2.bf16.msra.mxu0 0
        %1054 = vmatprep.subr.bf16.mxu0 0
        %1055 = vmatpush2.bf16.msra.mxu0 0
        %1056 = vmatprep.subr.bf16.mxu0 0
        %1057 = vmatpush2.bf16.msra.mxu0 0
        %1058 = vmatprep.mubr.bf16.mxu0 0
        %1059 = vmatmul.mubr.bf16.gmra.mxu0 %v1020
        %v1060 = vpop.f32.mrf.mxu0
        %v1061 = vadd.f32 0.0, %v1060
        %v1062 = vpop.f32.mrf.mxu0
        %v1063 = vpop.f32.mrf.mxu0
        %v1064 = vpop.f32.mrf.mxu0
        %1065 = vdwg.mxu0
        %v1066 = vpack.c.bf16 %v1061, %v1061
        %1068 = vrot.lane.b32.xlu0 %v946, 120
        %v1069 = vpop.permute.xlu0 %1068
        %1071 = vrot.lane.b32.xlu0 %v947, 120
        %v1072 = vpop.permute.xlu0 %1071
        %v1074 = vsel %vm952, %v1069, 0
        %v1077 = vsel %vm952, %v1072, 0
        %1079 = vmatprep.subr.bf16.mxu0 0
        %1080 = vmatpush1.bf16.xpose.msra.mxu0 0
        %1081 = vmatprep.subr.bf16.mxu0 0
        %1082 = vmatpush1.bf16.xpose.msra.mxu0 0
        %1083 = vmatprep.subr.bf16.mxu0 0
        %1084 = vmatpush1.bf16.xpose.msra.mxu0 0
        %1085 = vmatprep.subr.bf16.mxu0 0
        %1086 = vmatpush1.bf16.xpose.msra.mxu0 0
        %1087 = vmatprep.subr.bf16.mxu0 0
        %1088 = vmatpush1.bf16.xpose.msra.mxu0 0
        %1089 = vmatprep.subr.bf16.mxu0 0
        %1090 = vmatpush1.bf16.xpose.msra.mxu0 0
        %1091 = vmatprep.subr.bf16.mxu0 0
        %1092 = vmatpush1.bf16.xpose.msra.mxu0 0
        %1093 = vmatprep.subr.bf16.mxu0 0
        %1094 = vmatpush1.bf16.xpose.msra.mxu0 %v1077
        %1095 = vmatprep.subr.bf16.mxu0 0
        %1096 = vmatpush2.bf16.xpose.msra.mxu0 0
        %1097 = vmatprep.subr.bf16.mxu0 0
        %1098 = vmatpush2.bf16.xpose.msra.mxu0 0
        %1099 = vmatprep.subr.bf16.mxu0 0
        %1100 = vmatpush2.bf16.xpose.msra.mxu0 0
        %1101 = vmatprep.subr.bf16.mxu0 0
        %1102 = vmatpush2.bf16.xpose.msra.mxu0 0
        %1103 = vmatprep.subr.bf16.mxu0 0
        %1104 = vmatpush2.bf16.xpose.msra.mxu0 0
        %1105 = vmatprep.subr.bf16.mxu0 0
        %1106 = vmatpush2.bf16.xpose.msra.mxu0 0
        %1107 = vmatprep.subr.bf16.mxu0 0
        %1108 = vmatpush2.bf16.xpose.msra.mxu0 0
        %1109 = vmatprep.subr.bf16.mxu0 0
        %1110 = vmatpush2.bf16.xpose.msra.mxu0 0
        %1111 = vmatprep.mubr.bf16.mxu0 0
        %1112 = vmatmul.mubr.bf16.gmra.mxu0 %v1074
        %v1113 = vpop.f32.mrf.mxu0
        %v1114 = vadd.f32 0.0, %v1113
        %v1115 = vpop.f32.mrf.mxu0
        %v1116 = vpop.f32.mrf.mxu0
        %v1117 = vpop.f32.mrf.mxu0
        %1118 = vdwg.mxu0
        %v1119 = vmul.f32 %v1114, 0.35355338
        %v1120 = vadd.f32 %v1119, %v1004
        %v1121 = vsel %vm952, %v1120, -inf
        %1122 = vmax.xlane.f32.xlu0 %v1121
        %v1123 = vpop.xlane.xlu0 %1122
        %v1124 = vsub.f32 %v1120, %v1123
        %v1125 = vmul.f32 %v1124, 1.442695
        %v1126 = vpow.pop %v1125
        %v1127 = vsel %vm952, %v1126, 0.0
        %1128 = vadd.xlane.f32.xlu0 %v1127
        %v1129 = vpop.xlane.xlu0 %1128
        %v1130 = vrcp.pop %v1129
        %v1131 = vmul.f32 %v1126, %v1130
        %v1132 = vpack.c.bf16 %v1131, %v1131
        %1134 = vrot.lane.b32.xlu0 %v948, 120
        %v1135 = vpop.permute.xlu0 %1134
        %v1137 = vsel %vm952, %v1132, 0
        %v1140 = vsel %vm1022, %v1135, 0
        %1142 = vmatprep.subr.bf16.mxu0 0
        %1143 = vmatpush1.bf16.msra.mxu0 0
        %1144 = vmatprep.subr.bf16.mxu0 0
        %1145 = vmatpush1.bf16.msra.mxu0 0
        %1146 = vmatprep.subr.bf16.mxu0 0
        %1147 = vmatpush1.bf16.msra.mxu0 0
        %1148 = vmatprep.subr.bf16.mxu0 0
        %1149 = vmatpush1.bf16.msra.mxu0 0
        %1150 = vmatprep.subr.bf16.mxu0 0
        %1151 = vmatpush1.bf16.msra.mxu0 0
        %1152 = vmatprep.subr.bf16.mxu0 0
        %1153 = vmatpush1.bf16.msra.mxu0 0
        %1154 = vmatprep.subr.bf16.mxu0 0
        %1155 = vmatpush1.bf16.msra.mxu0 0
        %1156 = vmatprep.subr.bf16.mxu0 0
        %1157 = vmatpush1.bf16.msra.mxu0 %v1140
        %1158 = vmatprep.subr.bf16.mxu0 0
        %1159 = vmatpush2.bf16.msra.mxu0 0
        %1160 = vmatprep.subr.bf16.mxu0 0
        %1161 = vmatpush2.bf16.msra.mxu0 0
        %1162 = vmatprep.subr.bf16.mxu0 0
        %1163 = vmatpush2.bf16.msra.mxu0 0
        %1164 = vmatprep.subr.bf16.mxu0 0
        %1165 = vmatpush2.bf16.msra.mxu0 0
        %1166 = vmatprep.subr.bf16.mxu0 0
        %1167 = vmatpush2.bf16.msra.mxu0 0
        %1168 = vmatprep.subr.bf16.mxu0 0
        %1169 = vmatpush2.bf16.msra.mxu0 0
        %1170 = vmatprep.subr.bf16.mxu0 0
        %1171 = vmatpush2.bf16.msra.mxu0 0
        %1172 = vmatprep.subr.bf16.mxu0 0
        %1173 = vmatpush2.bf16.msra.mxu0 0
        %1174 = vmatprep.mubr.bf16.mxu0 0
        %1175 = vmatmul.mubr.bf16.gmra.mxu0 %v1137
        %v1176 = vpop.f32.mrf.mxu0
        %v1177 = vadd.f32 0.0, %v1176
        %v1178 = vpop.f32.mrf.mxu0
        %v1179 = vpop.f32.mrf.mxu0
        %v1180 = vpop.f32.mrf.mxu0
        %1181 = vdwg.mxu0
        %v1182 = vpack.c.bf16 %v1177, %v1177
        %v1184 = vsel %vm952, %v1182, 0
        %v1187 = vsel %vm1022, %v712, 0
        %1189 = vmatprep.subr.bf16.mxu0 0
        %1190 = vmatpush1.bf16.msra.mxu0 0
        %1191 = vmatprep.subr.bf16.mxu0 0
        %1192 = vmatpush1.bf16.msra.mxu0 0
        %1193 = vmatprep.subr.bf16.mxu0 0
        %1194 = vmatpush1.bf16.msra.mxu0 0
        %1195 = vmatprep.subr.bf16.mxu0 0
        %1196 = vmatpush1.bf16.msra.mxu0 0
        %1197 = vmatprep.subr.bf16.mxu0 0
        %1198 = vmatpush1.bf16.msra.mxu0 0
        %1199 = vmatprep.subr.bf16.mxu0 0
        %1200 = vmatpush1.bf16.msra.mxu0 0
        %1201 = vmatprep.subr.bf16.mxu0 0
        %1202 = vmatpush1.bf16.msra.mxu0 0
        %1203 = vmatprep.subr.bf16.mxu0 0
        %1204 = vmatpush1.bf16.msra.mxu0 %v1187
        %1205 = vmatprep.subr.bf16.mxu0 0
        %1206 = vmatpush2.bf16.msra.mxu0 0
        %1207 = vmatprep.subr.bf16.mxu0 0
        %1208 = vmatpush2.bf16.msra.mxu0 0
        %1209 = vmatprep.subr.bf16.mxu0 0
        %1210 = vmatpush2.bf16.msra.mxu0 0
        %1211 = vmatprep.subr.bf16.mxu0 0
        %1212 = vmatpush2.bf16.msra.mxu0 0
        %1213 = vmatprep.subr.bf16.mxu0 0
        %1214 = vmatpush2.bf16.msra.mxu0 0
        %1215 = vmatprep.subr.bf16.mxu0 0
        %1216 = vmatpush2.bf16.msra.mxu0 0
        %1217 = vmatprep.subr.bf16.mxu0 0
        %1218 = vmatpush2.bf16.msra.mxu0 0
        %1219 = vmatprep.subr.bf16.mxu0 0
        %1220 = vmatpush2.bf16.msra.mxu0 0
        %1221 = vmatprep.mubr.bf16.mxu0 0
        %1222 = vmatmul.mubr.bf16.gmra.mxu0 %v1184
        %v1223 = vpop.f32.mrf.mxu0
        %v1224 = vadd.f32 0.0, %v1223
        %v1225 = vpop.f32.mrf.mxu0
        %v1226 = vpop.f32.mrf.mxu0
        %v1227 = vpop.f32.mrf.mxu0
        %1228 = vdwg.mxu0
        %v1230 = vsel %vm952, %v1066, 0
        %v1233 = vsel %vm1022, %v711, 0
        %1235 = vmatprep.subr.bf16.mxu0 0
        %1236 = vmatpush1.bf16.msra.mxu0 0
        %1237 = vmatprep.subr.bf16.mxu0 0
        %1238 = vmatpush1.bf16.msra.mxu0 0
        %1239 = vmatprep.subr.bf16.mxu0 0
        %1240 = vmatpush1.bf16.msra.mxu0 0
        %1241 = vmatprep.subr.bf16.mxu0 0
        %1242 = vmatpush1.bf16.msra.mxu0 0
        %1243 = vmatprep.subr.bf16.mxu0 0
        %1244 = vmatpush1.bf16.msra.mxu0 0
        %1245 = vmatprep.subr.bf16.mxu0 0
        %1246 = vmatpush1.bf16.msra.mxu0 0
        %1247 = vmatprep.subr.bf16.mxu0 0
        %1248 = vmatpush1.bf16.msra.mxu0 0
        %1249 = vmatprep.subr.bf16.mxu0 0
        %1250 = vmatpush1.bf16.msra.mxu0 %v1233
        %1251 = vmatprep.subr.bf16.mxu0 0
        %1252 = vmatpush2.bf16.msra.mxu0 0
        %1253 = vmatprep.subr.bf16.mxu0 0
        %1254 = vmatpush2.bf16.msra.mxu0 0
        %1255 = vmatprep.subr.bf16.mxu0 0
        %1256 = vmatpush2.bf16.msra.mxu0 0
        %1257 = vmatprep.subr.bf16.mxu0 0
        %1258 = vmatpush2.bf16.msra.mxu0 0
        %1259 = vmatprep.subr.bf16.mxu0 0
        %1260 = vmatpush2.bf16.msra.mxu0 0
        %1261 = vmatprep.subr.bf16.mxu0 0
        %1262 = vmatpush2.bf16.msra.mxu0 0
        %1263 = vmatprep.subr.bf16.mxu0 0
        %1264 = vmatpush2.bf16.msra.mxu0 0
        %1265 = vmatprep.subr.bf16.mxu0 0
        %1266 = vmatpush2.bf16.msra.mxu0 0
        %1267 = vmatprep.mubr.bf16.mxu0 0
        %1268 = vmatmul.mubr.bf16.gmra.mxu0 %v1230
        %v1269 = vpop.f32.mrf.mxu0
        %v1270 = vadd.f32 %v1224, %v1269
        %v1271 = vpop.f32.mrf.mxu0
        %v1272 = vpop.f32.mrf.mxu0
        %v1273 = vpop.f32.mrf.mxu0
        %1274 = vdwg.mxu0
        %1275 = vrot.lane.b32.xlu0 %v946, 112
        %v1276 = vpop.permute.xlu0 %1275
        %1277 = vrot.lane.b32.xlu0 %v947, 112
        %v1278 = vpop.permute.xlu0 %1277
        %v1280 = vsel %vm952, %v1276, 0
        %v1283 = vsel %vm952, %v1278, 0
        %1285 = vmatprep.subr.bf16.mxu0 0
        %1286 = vmatpush1.bf16.xpose.msra.mxu0 0
        %1287 = vmatprep.subr.bf16.mxu0 0
        %1288 = vmatpush1.bf16.xpose.msra.mxu0 0
        %1289 = vmatprep.subr.bf16.mxu0 0
        %1290 = vmatpush1.bf16.xpose.msra.mxu0 0
        %1291 = vmatprep.subr.bf16.mxu0 0
        %1292 = vmatpush1.bf16.xpose.msra.mxu0 0
        %1293 = vmatprep.subr.bf16.mxu0 0
        %1294 = vmatpush1.bf16.xpose.msra.mxu0 0
        %1295 = vmatprep.subr.bf16.mxu0 0
        %1296 = vmatpush1.bf16.xpose.msra.mxu0 0
        %1297 = vmatprep.subr.bf16.mxu0 0
        %1298 = vmatpush1.bf16.xpose.msra.mxu0 0
        %1299 = vmatprep.subr.bf16.mxu0 0
        %1300 = vmatpush1.bf16.xpose.msra.mxu0 %v1283
        %1301 = vmatprep.subr.bf16.mxu0 0
        %1302 = vmatpush2.bf16.xpose.msra.mxu0 0
        %1303 = vmatprep.subr.bf16.mxu0 0
        %1304 = vmatpush2.bf16.xpose.msra.mxu0 0
        %1305 = vmatprep.subr.bf16.mxu0 0
        %1306 = vmatpush2.bf16.xpose.msra.mxu0 0
        %1307 = vmatprep.subr.bf16.mxu0 0
        %1308 = vmatpush2.bf16.xpose.msra.mxu0 0
        %1309 = vmatprep.subr.bf16.mxu0 0
        %1310 = vmatpush2.bf16.xpose.msra.mxu0 0
        %1311 = vmatprep.subr.bf16.mxu0 0
        %1312 = vmatpush2.bf16.xpose.msra.mxu0 0
        %1313 = vmatprep.subr.bf16.mxu0 0
        %1314 = vmatpush2.bf16.xpose.msra.mxu0 0
        %1315 = vmatprep.subr.bf16.mxu0 0
        %1316 = vmatpush2.bf16.xpose.msra.mxu0 0
        %1317 = vmatprep.mubr.bf16.mxu0 0
        %1318 = vmatmul.mubr.bf16.gmra.mxu0 %v1280
        %v1319 = vpop.f32.mrf.mxu0
        %v1320 = vadd.f32 0.0, %v1319
        %v1321 = vpop.f32.mrf.mxu0
        %v1322 = vpop.f32.mrf.mxu0
        %v1323 = vpop.f32.mrf.mxu0
        %1324 = vdwg.mxu0
        %v1325 = vmul.f32 %v1320, 0.35355338
        %v1326 = vadd.f32 %v1325, %v1004
        %v1327 = vsel %vm952, %v1326, -inf
        %1328 = vmax.xlane.f32.xlu0 %v1327
        %v1329 = vpop.xlane.xlu0 %1328
        %v1330 = vsub.f32 %v1326, %v1329
        %v1331 = vmul.f32 %v1330, 1.442695
        %v1332 = vpow.pop %v1331
        %v1333 = vsel %vm952, %v1332, 0.0
        %1334 = vadd.xlane.f32.xlu0 %v1333
        %v1335 = vpop.xlane.xlu0 %1334
        %v1336 = vrcp.pop %v1335
        %v1337 = vmul.f32 %v1332, %v1336
        %v1338 = vpack.c.bf16 %v1337, %v1337
        %1339 = vrot.lane.b32.xlu0 %v948, 112
        %v1340 = vpop.permute.xlu0 %1339
        %v1342 = vsel %vm952, %v1338, 0
        %v1345 = vsel %vm1022, %v1340, 0
        %1347 = vmatprep.subr.bf16.mxu0 0
        %1348 = vmatpush1.bf16.msra.mxu0 0
        %1349 = vmatprep.subr.bf16.mxu0 0
        %1350 = vmatpush1.bf16.msra.mxu0 0
        %1351 = vmatprep.subr.bf16.mxu0 0
        %1352 = vmatpush1.bf16.msra.mxu0 0
        %1353 = vmatprep.subr.bf16.mxu0 0
        %1354 = vmatpush1.bf16.msra.mxu0 0
        %1355 = vmatprep.subr.bf16.mxu0 0
        %1356 = vmatpush1.bf16.msra.mxu0 0
        %1357 = vmatprep.subr.bf16.mxu0 0
        %1358 = vmatpush1.bf16.msra.mxu0 0
        %1359 = vmatprep.subr.bf16.mxu0 0
        %1360 = vmatpush1.bf16.msra.mxu0 0
        %1361 = vmatprep.subr.bf16.mxu0 0
        %1362 = vmatpush1.bf16.msra.mxu0 %v1345
        %1363 = vmatprep.subr.bf16.mxu0 0
        %1364 = vmatpush2.bf16.msra.mxu0 0
        %1365 = vmatprep.subr.bf16.mxu0 0
        %1366 = vmatpush2.bf16.msra.mxu0 0
        %1367 = vmatprep.subr.bf16.mxu0 0
        %1368 = vmatpush2.bf16.msra.mxu0 0
        %1369 = vmatprep.subr.bf16.mxu0 0
        %1370 = vmatpush2.bf16.msra.mxu0 0
        %1371 = vmatprep.subr.bf16.mxu0 0
        %1372 = vmatpush2.bf16.msra.mxu0 0
        %1373 = vmatprep.subr.bf16.mxu0 0
        %1374 = vmatpush2.bf16.msra.mxu0 0
        %1375 = vmatprep.subr.bf16.mxu0 0
        %1376 = vmatpush2.bf16.msra.mxu0 0
        %1377 = vmatprep.subr.bf16.mxu0 0
        %1378 = vmatpush2.bf16.msra.mxu0 0
        %1379 = vmatprep.mubr.bf16.mxu0 0
        %1380 = vmatmul.mubr.bf16.gmra.mxu0 %v1342
        %v1381 = vpop.f32.mrf.mxu0
        %v1382 = vadd.f32 0.0, %v1381
        %v1383 = vpop.f32.mrf.mxu0
        %v1384 = vpop.f32.mrf.mxu0
        %v1385 = vpop.f32.mrf.mxu0
        %1386 = vdwg.mxu0
        %v1387 = vpack.c.bf16 %v1382, %v1382
        %v1389 = vsel %vm952, %v1387, 0
        %v1392 = vsel %vm1022, %v713, 0
        %1394 = vmatprep.subr.bf16.mxu0 0
        %1395 = vmatpush1.bf16.msra.mxu0 0
        %1396 = vmatprep.subr.bf16.mxu0 0
        %1397 = vmatpush1.bf16.msra.mxu0 0
        %1398 = vmatprep.subr.bf16.mxu0 0
        %1399 = vmatpush1.bf16.msra.mxu0 0
        %1400 = vmatprep.subr.bf16.mxu0 0
        %1401 = vmatpush1.bf16.msra.mxu0 0
        %1402 = vmatprep.subr.bf16.mxu0 0
        %1403 = vmatpush1.bf16.msra.mxu0 0
        %1404 = vmatprep.subr.bf16.mxu0 0
        %1405 = vmatpush1.bf16.msra.mxu0 0
        %1406 = vmatprep.subr.bf16.mxu0 0
        %1407 = vmatpush1.bf16.msra.mxu0 0
        %1408 = vmatprep.subr.bf16.mxu0 0
        %1409 = vmatpush1.bf16.msra.mxu0 %v1392
        %1410 = vmatprep.subr.bf16.mxu0 0
        %1411 = vmatpush2.bf16.msra.mxu0 0
        %1412 = vmatprep.subr.bf16.mxu0 0
        %1413 = vmatpush2.bf16.msra.mxu0 0
        %1414 = vmatprep.subr.bf16.mxu0 0
        %1415 = vmatpush2.bf16.msra.mxu0 0
        %1416 = vmatprep.subr.bf16.mxu0 0
        %1417 = vmatpush2.bf16.msra.mxu0 0
        %1418 = vmatprep.subr.bf16.mxu0 0
        %1419 = vmatpush2.bf16.msra.mxu0 0
        %1420 = vmatprep.subr.bf16.mxu0 0
        %1421 = vmatpush2.bf16.msra.mxu0 0
        %1422 = vmatprep.subr.bf16.mxu0 0
        %1423 = vmatpush2.bf16.msra.mxu0 0
        %1424 = vmatprep.subr.bf16.mxu0 0
        %1425 = vmatpush2.bf16.msra.mxu0 0
        %1426 = vmatprep.mubr.bf16.mxu0 0
        %1427 = vmatmul.mubr.bf16.gmra.mxu0 %v1389
        %v1428 = vpop.f32.mrf.mxu0
        %v1429 = vadd.f32 0.0, %v1428
        %v1430 = vpop.f32.mrf.mxu0
        %v1431 = vpop.f32.mrf.mxu0
        %v1432 = vpop.f32.mrf.mxu0
        %1433 = vdwg.mxu0
        %v1434 = vadd.f32 %v1270, %v1429
        %1435 = vrot.lane.b32.xlu0 %v946, 104
        %v1436 = vpop.permute.xlu0 %1435
        %1437 = vrot.lane.b32.xlu0 %v947, 104
        %v1438 = vpop.permute.xlu0 %1437
        %v1440 = vsel %vm952, %v1436, 0
        %v1443 = vsel %vm952, %v1438, 0
        %1445 = vmatprep.subr.bf16.mxu0 0
        %1446 = vmatpush1.bf16.xpose.msra.mxu0 0
        %1447 = vmatprep.subr.bf16.mxu0 0
        %1448 = vmatpush1.bf16.xpose.msra.mxu0 0
        %1449 = vmatprep.subr.bf16.mxu0 0
        %1450 = vmatpush1.bf16.xpose.msra.mxu0 0
        %1451 = vmatprep.subr.bf16.mxu0 0
        %1452 = vmatpush1.bf16.xpose.msra.mxu0 0
        %1453 = vmatprep.subr.bf16.mxu0 0
        %1454 = vmatpush1.bf16.xpose.msra.mxu0 0
        %1455 = vmatprep.subr.bf16.mxu0 0
        %1456 = vmatpush1.bf16.xpose.msra.mxu0 0
        %1457 = vmatprep.subr.bf16.mxu0 0
        %1458 = vmatpush1.bf16.xpose.msra.mxu0 0
        %1459 = vmatprep.subr.bf16.mxu0 0
        %1460 = vmatpush1.bf16.xpose.msra.mxu0 %v1443
        %1461 = vmatprep.subr.bf16.mxu0 0
        %1462 = vmatpush2.bf16.xpose.msra.mxu0 0
        %1463 = vmatprep.subr.bf16.mxu0 0
        %1464 = vmatpush2.bf16.xpose.msra.mxu0 0
        %1465 = vmatprep.subr.bf16.mxu0 0
        %1466 = vmatpush2.bf16.xpose.msra.mxu0 0
        %1467 = vmatprep.subr.bf16.mxu0 0
        %1468 = vmatpush2.bf16.xpose.msra.mxu0 0
        %1469 = vmatprep.subr.bf16.mxu0 0
        %1470 = vmatpush2.bf16.xpose.msra.mxu0 0
        %1471 = vmatprep.subr.bf16.mxu0 0
        %1472 = vmatpush2.bf16.xpose.msra.mxu0 0
        %1473 = vmatprep.subr.bf16.mxu0 0
        %1474 = vmatpush2.bf16.xpose.msra.mxu0 0
        %1475 = vmatprep.subr.bf16.mxu0 0
        %1476 = vmatpush2.bf16.xpose.msra.mxu0 0
        %1477 = vmatprep.mubr.bf16.mxu0 0
        %1478 = vmatmul.mubr.bf16.gmra.mxu0 %v1440
        %v1479 = vpop.f32.mrf.mxu0
        %v1480 = vadd.f32 0.0, %v1479
        %v1481 = vpop.f32.mrf.mxu0
        %v1482 = vpop.f32.mrf.mxu0
        %v1483 = vpop.f32.mrf.mxu0
        %1484 = vdwg.mxu0
        %v1485 = vmul.f32 %v1480, 0.35355338
        %v1486 = vadd.f32 %v1485, %v1004
        %v1487 = vsel %vm952, %v1486, -inf
        %1488 = vmax.xlane.f32.xlu0 %v1487
        %v1489 = vpop.xlane.xlu0 %1488
        %v1490 = vsub.f32 %v1486, %v1489
        %v1491 = vmul.f32 %v1490, 1.442695
        %v1492 = vpow.pop %v1491
        %v1493 = vsel %vm952, %v1492, 0.0
        %1494 = vadd.xlane.f32.xlu0 %v1493
        %v1495 = vpop.xlane.xlu0 %1494
        %v1496 = vrcp.pop %v1495
        %v1497 = vmul.f32 %v1492, %v1496
        %v1498 = vpack.c.bf16 %v1497, %v1497
        %1499 = vrot.lane.b32.xlu0 %v948, 104
        %v1500 = vpop.permute.xlu0 %1499
        %v1502 = vsel %vm952, %v1498, 0
        %v1505 = vsel %vm1022, %v1500, 0
        %1507 = vmatprep.subr.bf16.mxu0 0
        %1508 = vmatpush1.bf16.msra.mxu0 0
        %1509 = vmatprep.subr.bf16.mxu0 0
        %1510 = vmatpush1.bf16.msra.mxu0 0
        %1511 = vmatprep.subr.bf16.mxu0 0
        %1512 = vmatpush1.bf16.msra.mxu0 0
        %1513 = vmatprep.subr.bf16.mxu0 0
        %1514 = vmatpush1.bf16.msra.mxu0 0
        %1515 = vmatprep.subr.bf16.mxu0 0
        %1516 = vmatpush1.bf16.msra.mxu0 0
        %1517 = vmatprep.subr.bf16.mxu0 0
        %1518 = vmatpush1.bf16.msra.mxu0 0
        %1519 = vmatprep.subr.bf16.mxu0 0
        %1520 = vmatpush1.bf16.msra.mxu0 0
        %1521 = vmatprep.subr.bf16.mxu0 0
        %1522 = vmatpush1.bf16.msra.mxu0 %v1505
        %1523 = vmatprep.subr.bf16.mxu0 0
        %1524 = vmatpush2.bf16.msra.mxu0 0
        %1525 = vmatprep.subr.bf16.mxu0 0
        %1526 = vmatpush2.bf16.msra.mxu0 0
        %1527 = vmatprep.subr.bf16.mxu0 0
        %1528 = vmatpush2.bf16.msra.mxu0 0
        %1529 = vmatprep.subr.bf16.mxu0 0
        %1530 = vmatpush2.bf16.msra.mxu0 0
        %1531 = vmatprep.subr.bf16.mxu0 0
        %1532 = vmatpush2.bf16.msra.mxu0 0
        %1533 = vmatprep.subr.bf16.mxu0 0
        %1534 = vmatpush2.bf16.msra.mxu0 0
        %1535 = vmatprep.subr.bf16.mxu0 0
        %1536 = vmatpush2.bf16.msra.mxu0 0
        %1537 = vmatprep.subr.bf16.mxu0 0
        %1538 = vmatpush2.bf16.msra.mxu0 0
        %1539 = vmatprep.mubr.bf16.mxu0 0
        %1540 = vmatmul.mubr.bf16.gmra.mxu0 %v1502
        %v1541 = vpop.f32.mrf.mxu0
        %v1542 = vadd.f32 0.0, %v1541
        %v1543 = vpop.f32.mrf.mxu0
        %v1544 = vpop.f32.mrf.mxu0
        %v1545 = vpop.f32.mrf.mxu0
        %1546 = vdwg.mxu0
        %v1547 = vpack.c.bf16 %v1542, %v1542
        %v1549 = vsel %vm952, %v1547, 0
        %v1552 = vsel %vm1022, %v714, 0
        %1554 = vmatprep.subr.bf16.mxu0 0
        %1555 = vmatpush1.bf16.msra.mxu0 0
        %1556 = vmatprep.subr.bf16.mxu0 0
        %1557 = vmatpush1.bf16.msra.mxu0 0
        %1558 = vmatprep.subr.bf16.mxu0 0
        %1559 = vmatpush1.bf16.msra.mxu0 0
        %1560 = vmatprep.subr.bf16.mxu0 0
        %1561 = vmatpush1.bf16.msra.mxu0 0
        %1562 = vmatprep.subr.bf16.mxu0 0
        %1563 = vmatpush1.bf16.msra.mxu0 0
        %1564 = vmatprep.subr.bf16.mxu0 0
        %1565 = vmatpush1.bf16.msra.mxu0 0
        %1566 = vmatprep.subr.bf16.mxu0 0
        %1567 = vmatpush1.bf16.msra.mxu0 0
        %1568 = vmatprep.subr.bf16.mxu0 0
        %1569 = vmatpush1.bf16.msra.mxu0 %v1552
        %1570 = vmatprep.subr.bf16.mxu0 0
        %1571 = vmatpush2.bf16.msra.mxu0 0
        %1572 = vmatprep.subr.bf16.mxu0 0
        %1573 = vmatpush2.bf16.msra.mxu0 0
        %1574 = vmatprep.subr.bf16.mxu0 0
        %1575 = vmatpush2.bf16.msra.mxu0 0
        %1576 = vmatprep.subr.bf16.mxu0 0
        %1577 = vmatpush2.bf16.msra.mxu0 0
        %1578 = vmatprep.subr.bf16.mxu0 0
        %1579 = vmatpush2.bf16.msra.mxu0 0
        %1580 = vmatprep.subr.bf16.mxu0 0
        %1581 = vmatpush2.bf16.msra.mxu0 0
        %1582 = vmatprep.subr.bf16.mxu0 0
        %1583 = vmatpush2.bf16.msra.mxu0 0
        %1584 = vmatprep.subr.bf16.mxu0 0
        %1585 = vmatpush2.bf16.msra.mxu0 0
        %1586 = vmatprep.mubr.bf16.mxu0 0
        %1587 = vmatmul.mubr.bf16.gmra.mxu0 %v1549
        %v1588 = vpop.f32.mrf.mxu0
        %v1589 = vadd.f32 0.0, %v1588
        %v1590 = vpop.f32.mrf.mxu0
        %v1591 = vpop.f32.mrf.mxu0
        %v1592 = vpop.f32.mrf.mxu0
        %1593 = vdwg.mxu0
        %v1594 = vadd.f32 %v1434, %v1589
        %v1595 = vadd.f32 %v698, %v1594
        %v1596 = vld [vmem:[%s11] sm:$0x1]
        %v1598 = vlaneseq
        %v1599 = vshrl.u32 %v1598, 7
        %v1600 = vsub.s32 0, %v1599
        %v1601 = vrot.slane %v1596, %v1600
        %v1603 = vadd.f32 %v1595, %v1601
        %v1604 = vld [vmem:[%s12] sm:$0x1]
        %v1605 = vld [vmem:[%s13] sm:$0x1]
        %v1606 = vsel %vm729, %v1603, 0.0
        %1607 = vadd.xlane.f32.xlu0 %v1606
        %v1608 = vpop.xlane.xlu0 %1607
        %v1609 = vmul.f32 %v1608, %v733
        %v1610 = vsub.f32 %v1603, %v1609
        %v1611 = vmul.f32 %v1610, %v1610
        %v1612 = vsel %vm729, %v1611, 0.0
        %1613 = vadd.xlane.f32.xlu0 %v1612
        %v1614 = vpop.xlane.xlu0 %1613
        %v1615 = vmul.f32 %v1614, 0.032258064
        %v1616 = vrsqrt.pop %v1615
        %v1617 = vmul.f32 %v1615, %v1616
        %vm1618 = vcmp.eq.f32.partialorder %v1615, inf
        %v1619 = vsel %vm1618, %v1615, %v1617
        %vm1620 = vcmp.eq.f32.partialorder %v1615, 0.0
        %v1621 = vand.u32 %v1615, 2147483648
        %v1622 = vsel %vm1620, %v1621, %v1619
        %v1623 = vadd.f32 %v1622, 1e-06
        %v1624 = vrcp.pop %v1623
        %v1626 = vlaneseq
        %v1627 = vshrl.u32 %v1626, 7
        %v1628 = vsub.s32 0, %v1627
        %v1629 = vrot.slane %v1604, %v1628
        %v1631 = vmul.f32 %v1629, %v1610
        %v1632 = vmul.f32 %v1631, %v1624
        %v1634 = vlaneseq
        %v1635 = vshrl.u32 %v1634, 7
        %v1636 = vsub.s32 0, %v1635
        %v1637 = vrot.slane %v1605, %v1636
        %v1639 = vadd.f32 %v1632, %v1637
        %v1640 = vpack.c.bf16 %v1639, %v1639
        %v1641 = vld [vmem:[%s15] sm:$0x1]
        %v1643 = vlaneseq
        %v1644 = vshrl.u32 %v1643, 7
        %v1645 = vsub.s32 0, %v1644
        %v1646 = vrot.slane %v1641, %v1645
        %v1652 = vunpack.c.l.b16 %v715
        %v1653 = vunpack.c.l.b16 %v716
        %v1654 = vunpack.c.l.b16 %v717
        %v1655 = vunpack.c.l.b16 %v718
        %v1656 = vpack.c.b16 %v1653, %v1652
        %v1657 = vpack.c.b16 %v1655, %v1654
        %v1661 = vsel %vm729, %v1640, 0
        %1663 = vmatprep.subr.bf16.mxu0 0
        %1664 = vmatpush1.bf16.msra.mxu0 0
        %1665 = vmatprep.subr.bf16.mxu0 0
        %1666 = vmatpush1.bf16.msra.mxu0 0
        %1667 = vmatprep.subr.bf16.mxu0 0
        %1668 = vmatpush1.bf16.msra.mxu0 0
        %1669 = vmatprep.subr.bf16.mxu0 0
        %1670 = vmatpush1.bf16.msra.mxu0 0
        %1671 = vmatprep.subr.bf16.mxu0 0
        %1672 = vmatpush1.bf16.msra.mxu0 0
        %1673 = vmatprep.subr.bf16.mxu0 0
        %1674 = vmatpush1.bf16.msra.mxu0 0
        %1675 = vmatprep.subr.bf16.mxu0 0
        %1676 = vmatpush1.bf16.msra.mxu0 %v1657
        %1677 = vmatprep.subr.bf16.mxu0 0
        %1678 = vmatpush1.bf16.msra.mxu0 %v1656
        %1679 = vmatprep.subr.bf16.mxu0 0
        %1680 = vmatpush2.bf16.msra.mxu0 0
        %1681 = vmatprep.subr.bf16.mxu0 0
        %1682 = vmatpush2.bf16.msra.mxu0 0
        %1683 = vmatprep.subr.bf16.mxu0 0
        %1684 = vmatpush2.bf16.msra.mxu0 0
        %1685 = vmatprep.subr.bf16.mxu0 0
        %1686 = vmatpush2.bf16.msra.mxu0 0
        %1687 = vmatprep.subr.bf16.mxu0 0
        %1688 = vmatpush2.bf16.msra.mxu0 0
        %1689 = vmatprep.subr.bf16.mxu0 0
        %1690 = vmatpush2.bf16.msra.mxu0 0
        %1691 = vmatprep.subr.bf16.mxu0 0
        %1692 = vmatpush2.bf16.msra.mxu0 0
        %1693 = vmatprep.subr.bf16.mxu0 0
        %1694 = vmatpush2.bf16.msra.mxu0 0
        %1695 = vmatprep.mubr.bf16.mxu0 0
        %1696 = vmatmul.mubr.bf16.gmra.mxu0 %v1661
        %v1697 = vpop.f32.mrf.mxu0
        %v1698 = vadd.f32 %v1646, %v1697
        %v1699 = vpop.f32.mrf.mxu0
        %v1700 = vpop.f32.mrf.mxu0
        %v1701 = vpop.f32.mrf.mxu0
        %1702 = vdwg.mxu0
        %v1703 = vmax.f32 %v1698, 0.0
        %v1704 = vpack.c.bf16 %v1703, %v1703
        %v1705 = vld [vmem:[%s17] sm:$0x1]
        %v1707 = vlaneseq
        %v1708 = vshrl.u32 %v1707, 7
        %v1709 = vsub.s32 0, %v1708
        %v1710 = vrot.slane %v1705, %v1709
        %v1720 = vunpack.c.l.b16 %v719
        %v1721 = vunpack.c.l.b16 %v720
        %v1722 = vunpack.c.l.b16 %v721
        %v1723 = vunpack.c.l.b16 %v722
        %v1724 = vunpack.c.l.b16 %v723
        %v1725 = vunpack.c.l.b16 %v724
        %v1726 = vunpack.c.l.b16 %v725
        %v1727 = vunpack.c.l.b16 %v726
        %v1728 = vpack.c.b16 %v1721, %v1720
        %v1729 = vpack.c.b16 %v1723, %v1722
        %v1730 = vpack.c.b16 %v1725, %v1724
        %v1731 = vpack.c.b16 %v1727, %v1726
        %vm1736 = vcmask 523264
        %v1738 = vsel %vm1736, %v1704, 0
        %1740 = vmatprep.subr.bf16.mxu0 0
        %1741 = vmatpush1.bf16.msra.mxu0 0
        %1742 = vmatprep.subr.bf16.mxu0 0
        %1743 = vmatpush1.bf16.msra.mxu0 0
        %1744 = vmatprep.subr.bf16.mxu0 0
        %1745 = vmatpush1.bf16.msra.mxu0 0
        %1746 = vmatprep.subr.bf16.mxu0 0
        %1747 = vmatpush1.bf16.msra.mxu0 0
        %1748 = vmatprep.subr.bf16.mxu0 0
        %1749 = vmatpush1.bf16.msra.mxu0 %v1731
        %1750 = vmatprep.subr.bf16.mxu0 0
        %1751 = vmatpush1.bf16.msra.mxu0 %v1730
        %1752 = vmatprep.subr.bf16.mxu0 0
        %1753 = vmatpush1.bf16.msra.mxu0 %v1729
        %1754 = vmatprep.subr.bf16.mxu0 0
        %1755 = vmatpush1.bf16.msra.mxu0 %v1728
        %1756 = vmatprep.subr.bf16.mxu0 0
        %1757 = vmatpush2.bf16.msra.mxu0 0
        %1758 = vmatprep.subr.bf16.mxu0 0
        %1759 = vmatpush2.bf16.msra.mxu0 0
        %1760 = vmatprep.subr.bf16.mxu0 0
        %1761 = vmatpush2.bf16.msra.mxu0 0
        %1762 = vmatprep.subr.bf16.mxu0 0
        %1763 = vmatpush2.bf16.msra.mxu0 0
        %1764 = vmatprep.subr.bf16.mxu0 0
        %1765 = vmatpush2.bf16.msra.mxu0 0
        %1766 = vmatprep.subr.bf16.mxu0 0
        %1767 = vmatpush2.bf16.msra.mxu0 0
        %1768 = vmatprep.subr.bf16.mxu0 0
        %1769 = vmatpush2.bf16.msra.mxu0 0
        %1770 = vmatprep.subr.bf16.mxu0 0
        %1771 = vmatpush2.bf16.msra.mxu0 0
        %1772 = vmatprep.mubr.bf16.mxu0 0
        %1773 = vmatmul.mubr.bf16.gmra.mxu0 %v1738
        %v1774 = vpop.f32.mrf.mxu0
        %v1775 = vadd.f32 %v1710, %v1774
        %v1776 = vpop.f32.mrf.mxu0
        %v1777 = vpop.f32.mrf.mxu0
        %v1778 = vpop.f32.mrf.mxu0
        %1779 = vdwg.mxu0
        %v1780 = vadd.f32 %v1603, %v1775
        %1781 = vst.msk [vmem:[%s692] sm:$0xff] %vm729, %v1780
        %s1782 = sand.u32 %s435, 1
        %s1783 = scalar_lea.sflag [#allocation4], %s1782
        %s1784 = sand.u32 %s435, 1
        %s1785 = smul.addr %s1784, 8
        %s1786 = scalar_lea.vmem [#allocation16], %s1785
        // Predicated region
        $region125: #{tpu_custom_call.1} parent=91 // pred_check
          %p1787 = pneg %p445
        $region126: #{tpu_custom_call.1} parent=91 // pred_check_branch
          %1789 = sbr.rel (%p1787) target = $region128
        $region127: #{tpu_custom_call.1} parent=91 // pred_region
          %s1791 = ssub.s32 128, 128
          %1792 = vsyncadd %s1783, %s1791
          %s1793 = smul.addr %s39, 128
          %s1794 = scalar_lea.hbm %s18, %s1793
          %s1796 = sshll.u32 %s1786, 4
          %s1797 = int_to_ptr.vmem [resolvable:$true] %s1796
          %1799 = dma.vmem_to_hbm [thread:$0]  %s1797, 128, %s1794, %s1783
        $region128: #{tpu_custom_call.1} parent=91 // pred_fallthru
          _
      $region92: #{tpu_custom_call.1} parent=5 // pred_fallthru
        _
      %p1800 = scmp.le.s32.totalorder 2, %s34
      // Predicated region
      $region129: #{tpu_custom_call.1} parent=5 // pred_check
        %p1801 = pneg %p1800
      $region130: #{tpu_custom_call.1} parent=5 // pred_check_branch
        %1803 = sbr.rel (%p1801) target = $region132
      $region131: #{tpu_custom_call.1} parent=5 // pred_region
        %s1804 = ssub.s32 %s34, 2
        // Predicated region
        $region133: #{tpu_custom_call.1} parent=131 // pred_check
          %p1805 = pneg %p451
        $region134: #{tpu_custom_call.1} parent=131 // pred_check_branch
          %1807 = sbr.rel (%p1805) target = $region136
        $region135: #{tpu_custom_call.1} parent=131 // pred_region
          %s1808 = sand.u32 %s436, 1
          %s1809 = scalar_lea.sflag [#allocation4], %s1808
          %s1810 = sand.u32 %s436, 1
          %s1811 = smul.addr %s1810, 8
          %s1812 = scalar_lea.vmem [#allocation16], %s1811
          %1813 = dma.done %s1809, 128
        $region136: #{tpu_custom_call.1} parent=131 // pred_fallthru
          _
      $region132: #{tpu_custom_call.1} parent=5 // pred_fallthru
        _
    $region6: #{tpu_custom_call.1} parent=1 // loop_footer
      %s38 = sadd.s32 1, %s34
    $region7: #{tpu_custom_call.1} parent=1 // loop_footer_branch
      %33 = sbr.rel target = $region3
    $region8: #{tpu_custom_call.1} parent=1 // loop_exit
      _
    %1814 = vsyncpa [#allocation3], 1
    %s1815 = scalar_lea.sflag [#allocation3], 1
    %1816 = vsyncpa %s1815, 1
    %1817 = vsyncpa [#allocation6], 1
    %1818 = vsyncpa [#allocation9], 1
    %1819 = vsyncpa [#allocation12], 1
    %1820 = vsyncpa [#allocation15], 1
    %1821 = vsyncpa [#allocation4], 1
    %s1822 = scalar_lea.sflag [#allocation4], 1
    %1823 = vsyncpa %s1822, 1

</llo_original>
